<compile_context>
chip_gen: v5e
topology: v5e:2x2
jax: 0.10.0
libtpu: 0.0.40
codegen_flags: <defaults>
</compile_context>

<pallas_src>
import functools

import jax
import jax.numpy as jnp
import numpy as np
from jax.experimental import pallas as pl
from jax.experimental.pallas import tpu as pltpu


def _conv_relu_kernel(x_ref, w_ref, b_ref, o_ref, acc_ref, *, KH, KW, TH,
                      apply_relu):
    """Computes one (batch n, H-tile h) output block.

    x_ref:   (1, Hp, Wp, Cin)       padded input image (resident across h tiles)
    w_ref:   (KH*KW, Cin, Coutp)    lane-dense weight slab (grid-resident)
    b_ref:   (1, Coutp)
    o_ref:   (1, TH, Wout, Coutp)   lane-dense output tile
    acc_ref: (TH*Wp, Coutp) f32     VMEM accumulator scratch
    """
    Cin = x_ref.shape[3]
    Wp = x_ref.shape[2]
    Wout = o_ref.shape[2]
    Coutp = o_ref.shape[3]
    M = TH * Wp

    h0 = pl.multiple_of(pl.program_id(1) * TH, TH)

    acc_ref[...] = jnp.zeros_like(acc_ref)

    for i in range(KH):
        # Full-width row window: only the leading H offset changes per tap, so
        # this is a cheap view (no relayout).  Wp is a multiple of 8, so the
        # (TH, Wp, Cin) -> (TH*Wp, Cin) merge is layout-free.
        rows = x_ref[0, pl.ds(h0 + i, TH), :, :].reshape(M, Cin)
        for j in range(KW):
            # W shift of j pixels expressed as a sublane rotation (XLU slot),
            # not an unaligned strided slice.  Wrapped-around rows only affect
            # output columns w >= Wout, which are sliced away below.
            shifted = pltpu.roll(rows, shift=M - j, axis=0) if j else rows
            acc_ref[...] += jnp.dot(shifted, w_ref[i * KW + j],
                                    preferred_element_type=jnp.float32)

    y = acc_ref[...] + b_ref[...]            # (M, Coutp) + (1, Coutp) broadcast
    if apply_relu:
        y = jnp.maximum(y, 0.0)
    y = y.reshape(TH, Wp, Coutp)[:, :Wout, :]
    o_ref[0] = y.astype(o_ref.dtype)


def conv2d_forward(x_nchw, weight, bias, *, stride=1, same_padding=True,
                   relu=True, compute_dtype=None):
    """Equivalent of the PyTorch Conv2d module's forward (bn=False)."""
    assert stride == 1, "only stride=1 (the module default) is implemented"
    N, Cin, Hin, Win = x_nchw.shape
    Cout, Cin_w, KH, KW = weight.shape
    assert Cin == Cin_w
    out_dtype = x_nchw.dtype

    pad = (KH - 1) // 2 if same_padding else 0
    Hout = Hin + 2 * pad - KH + 1
    Wout = Win + 2 * pad - KW + 1
    assert Hout > 0 and Wout > 0

    LANES, SUBLANES = 128, 8
    Cout_pad = ((Cout + LANES - 1) // LANES) * LANES     # lane-dense output
    Hp = Hin + 2 * pad
    Wp = ((Win + 2 * pad + SUBLANES - 1) // SUBLANES) * SUBLANES  # sublane-aligned
    TH = 8 if Hout % 8 == 0 else Hout                    # output-row tile

    # Layout glue (plain JAX): NCHW -> NHWC, zero-pad (extra right W columns are
    # only read by discarded output columns).
    x = jnp.transpose(x_nchw, (0, 2, 3, 1))
    x = jnp.pad(x, ((0, 0), (pad, pad), (pad, Wp - Win - pad), (0, 0)))

    # Weights: OIHW -> (KH*KW, Cin, Cout_pad) lane-dense slab; bias padded too.
    w = jnp.transpose(weight, (2, 3, 1, 0)).reshape(KH * KW, Cin, Cout)
    w = jnp.pad(w, ((0, 0), (0, 0), (0, Cout_pad - Cout)))
    b = jnp.pad(bias.reshape(1, Cout), ((0, 0), (0, Cout_pad - Cout)))

    if compute_dtype is not None:   # optional bf16 MXU path (accuracy permitting)
        x = x.astype(compute_dtype)
        w = w.astype(compute_dtype)

    grid = (N, Hout // TH)

    out = pl.pallas_call(
        functools.partial(_conv_relu_kernel, KH=KH, KW=KW, TH=TH,
                          apply_relu=relu),
        out_shape=jax.ShapeDtypeStruct((N, Hout, Wout, Cout_pad), out_dtype),
        grid=grid,
        in_specs=[
            pl.BlockSpec((1, Hp, Wp, Cin), lambda n, h: (n, 0, 0, 0)),
            pl.BlockSpec((KH * KW, Cin, Cout_pad), lambda n, h: (0, 0, 0)),
            pl.BlockSpec((1, Cout_pad), lambda n, h: (0, 0)),
        ],
        out_specs=pl.BlockSpec((1, TH, Wout, Cout_pad),
                               lambda n, h: (n, h, 0, 0)),
        scratch_shapes=[pltpu.VMEM((TH * Wp, Cout_pad), jnp.float32)],
        compiler_params=pltpu.CompilerParams(
            dimension_semantics=("parallel", "parallel"),
            vmem_limit_bytes=32 * 1024 * 1024,
        ),
    )(x, w, b)

    out = out[..., :Cout]                        # drop lane padding
    return jnp.transpose(out, (0, 3, 1, 2))      # back to NCHW


def _reference(x_nchw, weight, bias, *, same_padding=True, relu=True):
    pad = (weight.shape[2] - 1) // 2 if same_padding else 0
    y = jax.lax.conv_general_dilated(
        x_nchw, weight, window_strides=(1, 1),
        padding=[(pad, pad), (pad, pad)],
        dimension_numbers=("NCHW", "OIHW", "NCHW"))
    y = y + bias[None, :, None, None]
    if relu:
        y = jnp.maximum(y, 0.0)
    return y


if __name__ == "__main__":
    key = jax.random.PRNGKey(0)
    kx, kw, kb = jax.random.split(key, 3)

    # Module config: Conv2d(in_channels=4, out_channels=8, kernel_size=3,
    #                       stride=1, relu=True, same_padding=True, bn=False)
    N, Cin, H, W = 2, 4, 16, 16
    Cout, K = 8, 3

    x = jax.random.normal(kx, (N, Cin, H, W), dtype=jnp.float32)
    fan_in = Cin * K * K
    bound = 1.0 / np.sqrt(fan_in)
    weight = jax.random.uniform(kw, (Cout, Cin, K, K), jnp.float32,
                                minval=-bound, maxval=bound)
    bias = jax.random.uniform(kb, (Cout,), jnp.float32,
                              minval=-bound, maxval=bound)

    out = conv2d_forward(x, weight, bias, stride=1, same_padding=True,
                         relu=True)
    out = jax.block_until_ready(out)

    ref = _reference(x, weight, bias, same_padding=True, relu=True)
    np.testing.assert_allclose(np.asarray(out), np.asarray(ref),
                               rtol=1e-5, atol=1e-5)
    print("KERNEL_OK")
</pallas_src>

<mosaic_0001>
module attributes {stable_mosaic.version = 11 : i64} {
  func.func @_conv_relu_kernel(%arg0: i32, %arg1: i32, %arg2: memref<1x18x24x4xf32, #tpu.memory_space<vmem>>, %arg3: memref<9x4x128xf32, #tpu.memory_space<vmem>>, %arg4: memref<1x128xf32, #tpu.memory_space<vmem>>, %arg5: memref<1x8x16x128xf32, #tpu.memory_space<vmem>>, %arg6: memref<192x128xf32, #tpu.memory_space<vmem>>) attributes {dimension_semantics = [#tpu.dimension_semantics<parallel>, #tpu.dimension_semantics<parallel>], iteration_bounds = array<i64: 2, 2>, scalar_prefetch = 0 : i64, scratch_operands = 1 : i64, tpu.core_type = #tpu.core_type<tc>, window_params = [{transform_indices = @transform_0, window_bounds = array<i64: 1, 18, 24, 4>}, {pipeline_mode = #tpu.pipeline_mode<synchronous>, transform_indices = @transform_1, window_bounds = array<i64: 9, 4, 128>}, {pipeline_mode = #tpu.pipeline_mode<synchronous>, transform_indices = @transform_2, window_bounds = array<i64: 1, 128>}, {transform_indices = @transform_3, window_bounds = array<i64: 1, 8, 16, 128>}]} {
    %c8_i32 = arith.constant 8 : i32
    %0 = arith.muli %arg1, %c8_i32 : i32
    %1 = tpu.assume_multiple %0, 8 : i32
    %cst = arith.constant 0.000000e+00 : f32
    %2 = vector.broadcast %cst : f32 to vector<192x128xf32>
    %c0 = arith.constant 0 : index
    %c0_0 = arith.constant 0 : index
    %3 = vector.load %arg6[%c0, %c0_0] : memref<192x128xf32, #tpu.memory_space<vmem>>, vector<192x128xf32>
    tpu.vector_store %arg6[%c0, %c0_0], %2 {strides = array<i32>} : memref<192x128xf32, #tpu.memory_space<vmem>>, vector<192x128xf32>,
    %c0_i32 = arith.constant 0 : i32
    %4 = arith.addi %1, %c0_i32 : i32
    %c0_1 = arith.constant 0 : index
    %5 = arith.index_cast %4 : i32 to index
    %c0_2 = arith.constant 0 : index
    %c0_3 = arith.constant 0 : index
    %6 = vector.load %arg2[%c0_1, %5, %c0_2, %c0_3] : memref<1x18x24x4xf32, #tpu.memory_space<vmem>>, vector<1x8x24x4xf32>
    %7 = vector.shape_cast %6 : vector<1x8x24x4xf32> to vector<8x24x4xf32>
    %8 = vector.shape_cast %7 : vector<8x24x4xf32> to vector<192x4xf32>
    %c0_4 = arith.constant 0 : index
    %c0_5 = arith.constant 0 : index
    %9 = vector.load %arg6[%c0_4, %c0_5] : memref<192x128xf32, #tpu.memory_space<vmem>>, vector<192x128xf32>
    %c0_6 = arith.constant 0 : index
    %c0_7 = arith.constant 0 : index
    %c0_8 = arith.constant 0 : index
    %10 = vector.load %arg3[%c0_6, %c0_7, %c0_8] : memref<9x4x128xf32, #tpu.memory_space<vmem>>, vector<1x4x128xf32>
    %11 = vector.shape_cast %10 : vector<1x4x128xf32> to vector<4x128xf32>
    %cst_9 = arith.constant dense<0.000000e+00> : vector<192x128xf32>
    %12 = tpu.matmul %8, %11, %cst_9 {dimension_numbers = #tpu.dot_dimension_numbers<[1], [0], [0], [1], [0, 0, 1, 1], [], []>} : vector<192x4xf32>, vector<4x128xf32>, vector<192x128xf32> -> vector<192x128xf32>
    %13 = arith.addf %9, %12 : vector<192x128xf32>
    %c0_10 = arith.constant 0 : index
    %c0_11 = arith.constant 0 : index
    %14 = vector.load %arg6[%c0_10, %c0_11] : memref<192x128xf32, #tpu.memory_space<vmem>>, vector<192x128xf32>
    tpu.vector_store %arg6[%c0_10, %c0_11], %13 {strides = array<i32>} : memref<192x128xf32, #tpu.memory_space<vmem>>, vector<192x128xf32>,
    %c191_i32 = arith.constant 191 : i32
    %15 = tpu.dynamic_rotate %8 by %c191_i32 dim 0 : vector<192x4xf32>, i32 -> vector<192x4xf32>
    %c0_12 = arith.constant 0 : index
    %c0_13 = arith.constant 0 : index
    %16 = vector.load %arg6[%c0_12, %c0_13] : memref<192x128xf32, #tpu.memory_space<vmem>>, vector<192x128xf32>
    %c1 = arith.constant 1 : index
    %c0_14 = arith.constant 0 : index
    %c0_15 = arith.constant 0 : index
    %17 = vector.load %arg3[%c1, %c0_14, %c0_15] : memref<9x4x128xf32, #tpu.memory_space<vmem>>, vector<1x4x128xf32>
    %18 = vector.shape_cast %17 : vector<1x4x128xf32> to vector<4x128xf32>
    %cst_16 = arith.constant dense<0.000000e+00> : vector<192x128xf32>
    %19 = tpu.matmul %15, %18, %cst_16 {dimension_numbers = #tpu.dot_dimension_numbers<[1], [0], [0], [1], [0, 0, 1, 1], [], []>} : vector<192x4xf32>, vector<4x128xf32>, vector<192x128xf32> -> vector<192x128xf32>
    %20 = arith.addf %16, %19 : vector<192x128xf32>
    %c0_17 = arith.constant 0 : index
    %c0_18 = arith.constant 0 : index
    %21 = vector.load %arg6[%c0_17, %c0_18] : memref<192x128xf32, #tpu.memory_space<vmem>>, vector<192x128xf32>
    tpu.vector_store %arg6[%c0_17, %c0_18], %20 {strides = array<i32>} : memref<192x128xf32, #tpu.memory_space<vmem>>, vector<192x128xf32>,
    %c190_i32 = arith.constant 190 : i32
    %22 = tpu.dynamic_rotate %8 by %c190_i32 dim 0 : vector<192x4xf32>, i32 -> vector<192x4xf32>
    %c0_19 = arith.constant 0 : index
    %c0_20 = arith.constant 0 : index
    %23 = vector.load %arg6[%c0_19, %c0_20] : memref<192x128xf32, #tpu.memory_space<vmem>>, vector<192x128xf32>
    %c2 = arith.constant 2 : index
    %c0_21 = arith.constant 0 : index
    %c0_22 = arith.constant 0 : index
    %24 = vector.load %arg3[%c2, %c0_21, %c0_22] : memref<9x4x128xf32, #tpu.memory_space<vmem>>, vector<1x4x128xf32>
    %25 = vector.shape_cast %24 : vector<1x4x128xf32> to vector<4x128xf32>
    %cst_23 = arith.constant dense<0.000000e+00> : vector<192x128xf32>
    %26 = tpu.matmul %22, %25, %cst_23 {dimension_numbers = #tpu.dot_dimension_numbers<[1], [0], [0], [1], [0, 0, 1, 1], [], []>} : vector<192x4xf32>, vector<4x128xf32>, vector<192x128xf32> -> vector<192x128xf32>
    %27 = arith.addf %23, %26 : vector<192x128xf32>
    %c0_24 = arith.constant 0 : index
    %c0_25 = arith.constant 0 : index
    %28 = vector.load %arg6[%c0_24, %c0_25] : memref<192x128xf32, #tpu.memory_space<vmem>>, vector<192x128xf32>
    tpu.vector_store %arg6[%c0_24, %c0_25], %27 {strides = array<i32>} : memref<192x128xf32, #tpu.memory_space<vmem>>, vector<192x128xf32>,
    %c1_i32 = arith.constant 1 : i32
    %29 = arith.addi %1, %c1_i32 : i32
    %c0_26 = arith.constant 0 : index
    %30 = arith.index_cast %29 : i32 to index
    %c0_27 = arith.constant 0 : index
    %c0_28 = arith.constant 0 : index
    %31 = vector.load %arg2[%c0_26, %30, %c0_27, %c0_28] : memref<1x18x24x4xf32, #tpu.memory_space<vmem>>, vector<1x8x24x4xf32>
    %32 = vector.shape_cast %31 : vector<1x8x24x4xf32> to vector<8x24x4xf32>
    %33 = vector.shape_cast %32 : vector<8x24x4xf32> to vector<192x4xf32>
    %c0_29 = arith.constant 0 : index
    %c0_30 = arith.constant 0 : index
    %34 = vector.load %arg6[%c0_29, %c0_30] : memref<192x128xf32, #tpu.memory_space<vmem>>, vector<192x128xf32>
    %c3 = arith.constant 3 : index
    %c0_31 = arith.constant 0 : index
    %c0_32 = arith.constant 0 : index
    %35 = vector.load %arg3[%c3, %c0_31, %c0_32] : memref<9x4x128xf32, #tpu.memory_space<vmem>>, vector<1x4x128xf32>
    %36 = vector.shape_cast %35 : vector<1x4x128xf32> to vector<4x128xf32>
    %cst_33 = arith.constant dense<0.000000e+00> : vector<192x128xf32>
    %37 = tpu.matmul %33, %36, %cst_33 {dimension_numbers = #tpu.dot_dimension_numbers<[1], [0], [0], [1], [0, 0, 1, 1], [], []>} : vector<192x4xf32>, vector<4x128xf32>, vector<192x128xf32> -> vector<192x128xf32>
    %38 = arith.addf %34, %37 : vector<192x128xf32>
    %c0_34 = arith.constant 0 : index
    %c0_35 = arith.constant 0 : index
    %39 = vector.load %arg6[%c0_34, %c0_35] : memref<192x128xf32, #tpu.memory_space<vmem>>, vector<192x128xf32>
    tpu.vector_store %arg6[%c0_34, %c0_35], %38 {strides = array<i32>} : memref<192x128xf32, #tpu.memory_space<vmem>>, vector<192x128xf32>,
    %c191_i32_36 = arith.constant 191 : i32
    %40 = tpu.dynamic_rotate %33 by %c191_i32_36 dim 0 : vector<192x4xf32>, i32 -> vector<192x4xf32>
    %c0_37 = arith.constant 0 : index
    %c0_38 = arith.constant 0 : index
    %41 = vector.load %arg6[%c0_37, %c0_38] : memref<192x128xf32, #tpu.memory_space<vmem>>, vector<192x128xf32>
    %c4 = arith.constant 4 : index
    %c0_39 = arith.constant 0 : index
    %c0_40 = arith.constant 0 : index
    %42 = vector.load %arg3[%c4, %c0_39, %c0_40] : memref<9x4x128xf32, #tpu.memory_space<vmem>>, vector<1x4x128xf32>
    %43 = vector.shape_cast %42 : vector<1x4x128xf32> to vector<4x128xf32>
    %cst_41 = arith.constant dense<0.000000e+00> : vector<192x128xf32>
    %44 = tpu.matmul %40, %43, %cst_41 {dimension_numbers = #tpu.dot_dimension_numbers<[1], [0], [0], [1], [0, 0, 1, 1], [], []>} : vector<192x4xf32>, vector<4x128xf32>, vector<192x128xf32> -> vector<192x128xf32>
    %45 = arith.addf %41, %44 : vector<192x128xf32>
    %c0_42 = arith.constant 0 : index
    %c0_43 = arith.constant 0 : index
    %46 = vector.load %arg6[%c0_42, %c0_43] : memref<192x128xf32, #tpu.memory_space<vmem>>, vector<192x128xf32>
    tpu.vector_store %arg6[%c0_42, %c0_43], %45 {strides = array<i32>} : memref<192x128xf32, #tpu.memory_space<vmem>>, vector<192x128xf32>,
    %c190_i32_44 = arith.constant 190 : i32
    %47 = tpu.dynamic_rotate %33 by %c190_i32_44 dim 0 : vector<192x4xf32>, i32 -> vector<192x4xf32>
    %c0_45 = arith.constant 0 : index
    %c0_46 = arith.constant 0 : index
    %48 = vector.load %arg6[%c0_45, %c0_46] : memref<192x128xf32, #tpu.memory_space<vmem>>, vector<192x128xf32>
    %c5 = arith.constant 5 : index
    %c0_47 = arith.constant 0 : index
    %c0_48 = arith.constant 0 : index
    %49 = vector.load %arg3[%c5, %c0_47, %c0_48] : memref<9x4x128xf32, #tpu.memory_space<vmem>>, vector<1x4x128xf32>
    %50 = vector.shape_cast %49 : vector<1x4x128xf32> to vector<4x128xf32>
    %cst_49 = arith.constant dense<0.000000e+00> : vector<192x128xf32>
    %51 = tpu.matmul %47, %50, %cst_49 {dimension_numbers = #tpu.dot_dimension_numbers<[1], [0], [0], [1], [0, 0, 1, 1], [], []>} : vector<192x4xf32>, vector<4x128xf32>, vector<192x128xf32> -> vector<192x128xf32>
    %52 = arith.addf %48, %51 : vector<192x128xf32>
    %c0_50 = arith.constant 0 : index
    %c0_51 = arith.constant 0 : index
    %53 = vector.load %arg6[%c0_50, %c0_51] : memref<192x128xf32, #tpu.memory_space<vmem>>, vector<192x128xf32>
    tpu.vector_store %arg6[%c0_50, %c0_51], %52 {strides = array<i32>} : memref<192x128xf32, #tpu.memory_space<vmem>>, vector<192x128xf32>,
    %c2_i32 = arith.constant 2 : i32
    %54 = arith.addi %1, %c2_i32 : i32
    %c0_52 = arith.constant 0 : index
    %55 = arith.index_cast %54 : i32 to index
    %c0_53 = arith.constant 0 : index
    %c0_54 = arith.constant 0 : index
    %56 = vector.load %arg2[%c0_52, %55, %c0_53, %c0_54] : memref<1x18x24x4xf32, #tpu.memory_space<vmem>>, vector<1x8x24x4xf32>
    %57 = vector.shape_cast %56 : vector<1x8x24x4xf32> to vector<8x24x4xf32>
    %58 = vector.shape_cast %57 : vector<8x24x4xf32> to vector<192x4xf32>
    %c0_55 = arith.constant 0 : index
    %c0_56 = arith.constant 0 : index
    %59 = vector.load %arg6[%c0_55, %c0_56] : memref<192x128xf32, #tpu.memory_space<vmem>>, vector<192x128xf32>
    %c6 = arith.constant 6 : index
    %c0_57 = arith.constant 0 : index
    %c0_58 = arith.constant 0 : index
    %60 = vector.load %arg3[%c6, %c0_57, %c0_58] : memref<9x4x128xf32, #tpu.memory_space<vmem>>, vector<1x4x128xf32>
    %61 = vector.shape_cast %60 : vector<1x4x128xf32> to vector<4x128xf32>
    %cst_59 = arith.constant dense<0.000000e+00> : vector<192x128xf32>
    %62 = tpu.matmul %58, %61, %cst_59 {dimension_numbers = #tpu.dot_dimension_numbers<[1], [0], [0], [1], [0, 0, 1, 1], [], []>} : vector<192x4xf32>, vector<4x128xf32>, vector<192x128xf32> -> vector<192x128xf32>
    %63 = arith.addf %59, %62 : vector<192x128xf32>
    %c0_60 = arith.constant 0 : index
    %c0_61 = arith.constant 0 : index
    %64 = vector.load %arg6[%c0_60, %c0_61] : memref<192x128xf32, #tpu.memory_space<vmem>>, vector<192x128xf32>
    tpu.vector_store %arg6[%c0_60, %c0_61], %63 {strides = array<i32>} : memref<192x128xf32, #tpu.memory_space<vmem>>, vector<192x128xf32>,
    %c191_i32_62 = arith.constant 191 : i32
    %65 = tpu.dynamic_rotate %58 by %c191_i32_62 dim 0 : vector<192x4xf32>, i32 -> vector<192x4xf32>
    %c0_63 = arith.constant 0 : index
    %c0_64 = arith.constant 0 : index
    %66 = vector.load %arg6[%c0_63, %c0_64] : memref<192x128xf32, #tpu.memory_space<vmem>>, vector<192x128xf32>
    %c7 = arith.constant 7 : index
    %c0_65 = arith.constant 0 : index
    %c0_66 = arith.constant 0 : index
    %67 = vector.load %arg3[%c7, %c0_65, %c0_66] : memref<9x4x128xf32, #tpu.memory_space<vmem>>, vector<1x4x128xf32>
    %68 = vector.shape_cast %67 : vector<1x4x128xf32> to vector<4x128xf32>
    %cst_67 = arith.constant dense<0.000000e+00> : vector<192x128xf32>
    %69 = tpu.matmul %65, %68, %cst_67 {dimension_numbers = #tpu.dot_dimension_numbers<[1], [0], [0], [1], [0, 0, 1, 1], [], []>} : vector<192x4xf32>, vector<4x128xf32>, vector<192x128xf32> -> vector<192x128xf32>
    %70 = arith.addf %66, %69 : vector<192x128xf32>
    %c0_68 = arith.constant 0 : index
    %c0_69 = arith.constant 0 : index
    %71 = vector.load %arg6[%c0_68, %c0_69] : memref<192x128xf32, #tpu.memory_space<vmem>>, vector<192x128xf32>
    tpu.vector_store %arg6[%c0_68, %c0_69], %70 {strides = array<i32>} : memref<192x128xf32, #tpu.memory_space<vmem>>, vector<192x128xf32>,
    %c190_i32_70 = arith.constant 190 : i32
    %72 = tpu.dynamic_rotate %58 by %c190_i32_70 dim 0 : vector<192x4xf32>, i32 -> vector<192x4xf32>
    %c0_71 = arith.constant 0 : index
    %c0_72 = arith.constant 0 : index
    %73 = vector.load %arg6[%c0_71, %c0_72] : memref<192x128xf32, #tpu.memory_space<vmem>>, vector<192x128xf32>
    %c8 = arith.constant 8 : index
    %c0_73 = arith.constant 0 : index
    %c0_74 = arith.constant 0 : index
    %74 = vector.load %arg3[%c8, %c0_73, %c0_74] : memref<9x4x128xf32, #tpu.memory_space<vmem>>, vector<1x4x128xf32>
    %75 = vector.shape_cast %74 : vector<1x4x128xf32> to vector<4x128xf32>
    %cst_75 = arith.constant dense<0.000000e+00> : vector<192x128xf32>
    %76 = tpu.matmul %72, %75, %cst_75 {dimension_numbers = #tpu.dot_dimension_numbers<[1], [0], [0], [1], [0, 0, 1, 1], [], []>} : vector<192x4xf32>, vector<4x128xf32>, vector<192x128xf32> -> vector<192x128xf32>
    %77 = arith.addf %73, %76 : vector<192x128xf32>
    %c0_76 = arith.constant 0 : index
    %c0_77 = arith.constant 0 : index
    %78 = vector.load %arg6[%c0_76, %c0_77] : memref<192x128xf32, #tpu.memory_space<vmem>>, vector<192x128xf32>
    tpu.vector_store %arg6[%c0_76, %c0_77], %77 {strides = array<i32>} : memref<192x128xf32, #tpu.memory_space<vmem>>, vector<192x128xf32>,
    %c0_78 = arith.constant 0 : index
    %c0_79 = arith.constant 0 : index
    %79 = vector.load %arg6[%c0_78, %c0_79] : memref<192x128xf32, #tpu.memory_space<vmem>>, vector<192x128xf32>
    %c0_80 = arith.constant 0 : index
    %c0_81 = arith.constant 0 : index
    %80 = vector.load %arg4[%c0_80, %c0_81] : memref<1x128xf32, #tpu.memory_space<vmem>>, vector<1x128xf32>
    %81 = vector.broadcast %80 : vector<1x128xf32> to vector<192x128xf32>
    %82 = arith.addf %79, %81 : vector<192x128xf32>
    %cst_82 = arith.constant 0.000000e+00 : f32
    %83 = vector.broadcast %cst_82 : f32 to vector<192x128xf32>
    %84 = arith.maximumf %82, %83 : vector<192x128xf32>
    %85 = vector.shape_cast %84 : vector<192x128xf32> to vector<8x24x128xf32>
    %86 = vector.extract_strided_slice %85 {offsets = [0, 0, 0], sizes = [8, 16, 128], strides = [1, 1, 1]} : vector<8x24x128xf32> to vector<8x16x128xf32>
    %c0_83 = arith.constant 0 : index
    %c0_84 = arith.constant 0 : index
    %c0_85 = arith.constant 0 : index
    %c0_86 = arith.constant 0 : index
    %87 = vector.load %arg5[%c0_83, %c0_84, %c0_85, %c0_86] : memref<1x8x16x128xf32, #tpu.memory_space<vmem>>, vector<1x8x16x128xf32>
    %88 = vector.shape_cast %87 : vector<1x8x16x128xf32> to vector<8x16x128xf32>
    %89 = vector.shape_cast %86 : vector<8x16x128xf32> to vector<1x8x16x128xf32>
    tpu.vector_store %arg5[%c0_83, %c0_84, %c0_85, %c0_86], %89 {strides = array<i32>} : memref<1x8x16x128xf32, #tpu.memory_space<vmem>>, vector<1x8x16x128xf32>,
    return
  }
  func.func @transform_0(%arg0: i32, %arg1: i32) -> (i32, i32, i32, i32) {
    %c0_i32 = arith.constant 0 : i32
    %c0_i32_0 = arith.constant 0 : i32
    %c0_i32_1 = arith.constant 0 : i32
    %c0_i32_2 = arith.constant 0 : i32
    return %arg0, %c0_i32, %c0_i32_0, %c0_i32_1 : i32, i32, i32, i32
  }
  func.func @transform_1(%arg0: i32, %arg1: i32) -> (i32, i32, i32) {
    %c0_i32 = arith.constant 0 : i32
    %c0_i32_0 = arith.constant 0 : i32
    %c0_i32_1 = arith.constant 0 : i32
    %c0_i32_2 = arith.constant 0 : i32
    return %c0_i32, %c0_i32_0, %c0_i32_1 : i32, i32, i32
  }
  func.func @transform_2(%arg0: i32, %arg1: i32) -> (i32, i32) {
    %c0_i32 = arith.constant 0 : i32
    %c0_i32_0 = arith.constant 0 : i32
    %c0_i32_1 = arith.constant 0 : i32
    return %c0_i32, %c0_i32_0 : i32, i32
  }
  func.func @transform_3(%arg0: i32, %arg1: i32) -> (i32, i32, i32, i32) {
    %c0_i32 = arith.constant 0 : i32
    %c0_i32_0 = arith.constant 0 : i32
    %c0_i32_1 = arith.constant 0 : i32
    return %arg0, %arg1, %c0_i32, %c0_i32_0 : i32, i32, i32, i32
  }
}

</mosaic_0001>

<llo_original>
// kernel: tpu_custom_call.1
$region0: #{tpu_custom_call.1}
  #allocation0 [shape = 'u32[]', space=smem, size = 0x4, offset = 0x4, fixed_abs, tag = 'smem constant byte address 0x4 - core index']
  #allocation1 [shape = 'u32[72,128]{1,0:T(1,128)}', space=vmem, size = 0x9000, scoped, tag = 'internal scratch']
  #allocation2 [shape = 'f32[192,128]{1,0:T(8,128)}', space=vmem, size = 0x18000, scoped, tag = 'scratch operand']
  %s0 = inlined_call_operand.vmem [shape: f32[2,18,24,4], index: 0, kind: input, shape index: {}]
  %s1 = inlined_call_operand.vmem [shape: f32[9,4,128], index: 1, kind: input, shape index: {}]
  %s2 = inlined_call_operand.vmem [shape: f32[1,128], index: 2, kind: input, shape index: {}]
  %s3 = inlined_call_operand.hbm [shape: f32[2,16,16,128], index: 3, kind: output, shape index: {}]
  %s4 = sld [smem:[#allocation0]]
  $region45: #{tpu_custom_call.1} parent=0
    _
  %s6 = ssub.s32 1, %s4
  %s7 = scalar_select 0, %s6, %s4
  $region1: #{tpu_custom_call.1} parent=0
    #allocation3 [shape = 'u8[131072]{0}', space=vmem, size = 0x20000, scoped, tag = 'output window, operand 0']
    #allocation4 [shape = 's32[2]{0}', space=sflag, size = 0x8, scoped, tag = 'scoped memory for tpu_custom_call.1']
    %8 = vsyncpa [#allocation4], 0
    %s9 = scalar_lea.sflag [#allocation4], 1
    %10 = vsyncpa %s9, 0
    loop: start=0, step=1, limit=6
    $region2: #{tpu_custom_call.1} parent=1 // loop_pre_header
      _
    $region3: #{tpu_custom_call.1} parent=1 // loop_header
      %s12 = sphi 0, %s16
      %p13 = scmp.ge.s32.totalorder %s12, 6
      %s19 = sphi 0, %s31
      %s20 = sphi 0, %s27
      %s21 = sphi 0, %s19
      %s22 = sphi 0, %s20
      %s23 = sphi 0, %s21
      %s24 = sphi 0, %s22
      %s34 = sphi 0, %s36
      %s37 = sphi 0, %s34
      %s38 = sphi 0, %s37
      %s54 = sphi 0, %s38
      %s58 = sphi 0, %s58
      %s60 = sphi 0, %s58
      %s61 = sphi 0, %s60
      %s75 = sphi 0, %s61
      %s79 = sphi 0, %s79
      %s81 = sphi 0, %s79
      %s82 = sphi 0, %s81
      %s96 = sphi 0, %s82
      %s104 = sphi 0, %s106
      %s107 = sphi 0, %s104
      %s108 = sphi 0, %s107
      %s124 = sphi 0, %s108
    $region4: #{tpu_custom_call.1} parent=1 // loop_header_branch
      %15 = sbr.rel (%p13) target = $region8
    $region5: #{tpu_custom_call.1} parent=1 // loop_body
      %s17 = ssub.s32 %s12, 1
      %s18 = ssub.s32 %s12, 2
      %s25 = sadd.s32 1, %s20
      %p26 = scmp.ge.s32.totalorder %s25, 2
      %s27 = scalar_select %p26, 0, %s25
      %s28 = sadd.s32 1, %s19
      %s29 = scalar_select %p26, %s28, %s19
      %p30 = scmp.ge.s32.totalorder %s29, 2
      %s31 = scalar_select %p30, 0, %s29
      %s32 = ssub.s32 %s19, %s31
      %p33 = scmp.eq.s32.totalorder %s32, 0
      %s35 = sadd.s32 %s34, 1
      %s36 = scalar_select %p33, %s34, %s35
      %p39 = pneg %p33
      %p40 = scmp.eq.s32.totalorder %s12, 3
      %p41 = por %p39, %p40
      %p42 = scmp.ne.s32.totalorder %s34, %s37
      %p43 = scmp.eq.s32.totalorder %s12, 0
      %p44 = por %p42, %p43
      %p45 = scmp.ne.s32.totalorder %s34, %s37
      %p46 = scmp.eq.s32.totalorder %s17, 3
      %p47 = por %p45, %p46
      %p48 = scmp.ne.s32.totalorder %s37, %s38
      %p49 = scmp.eq.s32.totalorder %s17, 0
      %p50 = por %p48, %p49
      %p51 = scmp.ne.s32.totalorder %s37, %s38
      %p52 = scmp.eq.s32.totalorder %s18, 3
      %p53 = por %p51, %p52
      %p55 = scmp.ne.s32.totalorder %s38, %s54
      %p56 = scmp.eq.s32.totalorder %s18, 0
      %p57 = por %p55, %p56
      %s59 = sadd.s32 %s58, 1
      %p62 = scmp.eq.s32.totalorder %s12, 3
      %p63 = scmp.ne.s32.totalorder %s58, %s60
      %p64 = scmp.eq.s32.totalorder %s12, 0
      %p65 = por %p63, %p64
      %p66 = scmp.ne.s32.totalorder %s58, %s60
      %p67 = scmp.eq.s32.totalorder %s17, 3
      %p68 = por %p66, %p67
      %p69 = scmp.ne.s32.totalorder %s60, %s61
      %p70 = scmp.eq.s32.totalorder %s17, 0
      %p71 = por %p69, %p70
      %p72 = scmp.ne.s32.totalorder %s60, %s61
      %p73 = scmp.eq.s32.totalorder %s18, 3
      %p74 = por %p72, %p73
      %p76 = scmp.ne.s32.totalorder %s61, %s75
      %p77 = scmp.eq.s32.totalorder %s18, 0
      %p78 = por %p76, %p77
      %s80 = sadd.s32 %s79, 1
      %p83 = scmp.eq.s32.totalorder %s12, 3
      %p84 = scmp.ne.s32.totalorder %s79, %s81
      %p85 = scmp.eq.s32.totalorder %s12, 0
      %p86 = por %p84, %p85
      %p87 = scmp.ne.s32.totalorder %s79, %s81
      %p88 = scmp.eq.s32.totalorder %s17, 3
      %p89 = por %p87, %p88
      %p90 = scmp.ne.s32.totalorder %s81, %s82
      %p91 = scmp.eq.s32.totalorder %s17, 0
      %p92 = por %p90, %p91
      %p93 = scmp.ne.s32.totalorder %s81, %s82
      %p94 = scmp.eq.s32.totalorder %s18, 3
      %p95 = por %p93, %p94
      %p97 = scmp.ne.s32.totalorder %s82, %s96
      %p98 = scmp.eq.s32.totalorder %s18, 0
      %p99 = por %p97, %p98
      %s100 = ssub.s32 %s19, %s31
      %s101 = ssub.s32 %s20, %s27
      %s102 = sor.u32 %s100, %s101
      %p103 = scmp.eq.s32.totalorder %s102, 0
      %s105 = sadd.s32 %s104, 1
      %s106 = scalar_select %p103, %s104, %s105
      %p109 = pneg %p103
      %p110 = scmp.eq.s32.totalorder %s12, 3
      %p111 = por %p109, %p110
      %p112 = scmp.ne.s32.totalorder %s104, %s107
      %p113 = scmp.eq.s32.totalorder %s12, 0
      %p114 = por %p112, %p113
      %p115 = scmp.ne.s32.totalorder %s104, %s107
      %p116 = scmp.eq.s32.totalorder %s17, 3
      %p117 = por %p115, %p116
      %p118 = scmp.ne.s32.totalorder %s107, %s108
      %p119 = scmp.eq.s32.totalorder %s17, 0
      %p120 = por %p118, %p119
      %p121 = scmp.ne.s32.totalorder %s107, %s108
      %p122 = scmp.eq.s32.totalorder %s18, 3
      %p123 = por %p121, %p122
      %p125 = scmp.ne.s32.totalorder %s108, %s124
      %p126 = scmp.eq.s32.totalorder %s18, 0
      %p127 = por %p125, %p126
      %p128 = scmp.le.s32.totalorder 1, %s12
      %p129 = scmp.lt.s32.totalorder %s12, 5
      %p130 = pnand %p128, %p129
      %p131 = pneg %p130
      // Predicated region
      $region9: #{tpu_custom_call.1} parent=5 // pred_check
        _
      $region10: #{tpu_custom_call.1} parent=5 // pred_check_branch
        %133 = sbr.rel (%p130) target = $region12
      $region11: #{tpu_custom_call.1} parent=5 // pred_region
        %s134 = ssub.s32 %s12, 1
        // Predicated region
        $region13: #{tpu_custom_call.1} parent=11 // pred_check
          %p135 = pneg %p71
        $region14: #{tpu_custom_call.1} parent=11 // pred_check_branch
          %137 = sbr.rel (%p135) target = $region16
        $region15: #{tpu_custom_call.1} parent=11 // pred_region
          _
        $region16: #{tpu_custom_call.1} parent=11 // pred_fallthru
          _
        // Predicated region
        $region17: #{tpu_custom_call.1} parent=11 // pred_check
          %p138 = pneg %p92
        $region18: #{tpu_custom_call.1} parent=11 // pred_check_branch
          %140 = sbr.rel (%p138) target = $region20
        $region19: #{tpu_custom_call.1} parent=11 // pred_region
          _
        $region20: #{tpu_custom_call.1} parent=11 // pred_fallthru
          _
      $region12: #{tpu_custom_call.1} parent=5 // pred_fallthru
        _
      %p141 = scmp.lt.s32.totalorder %s12, 4
      // Predicated region
      $region21: #{tpu_custom_call.1} parent=5 // pred_check
        %p142 = pneg %p141
      $region22: #{tpu_custom_call.1} parent=5 // pred_check_branch
        %144 = sbr.rel (%p142) target = $region24
      $region23: #{tpu_custom_call.1} parent=5 // pred_region
        // Predicated region
        $region25: #{tpu_custom_call.1} parent=23 // pred_check
          %p145 = pneg %p44
        $region26: #{tpu_custom_call.1} parent=23 // pred_check_branch
          %147 = sbr.rel (%p145) target = $region28
        $region27: #{tpu_custom_call.1} parent=23 // pred_region
          %p148 = scmp.lt.s32.totalorder %s19, 1
          %s149 = scalar_select %p148, %s19, 1
          %s150 = smul.addr %s149, 54
          %s151 = smul.addr %s150, 8
          %s152 = scalar_lea.vmem %s0, %s151
        $region28: #{tpu_custom_call.1} parent=23 // pred_fallthru
          _
      $region24: #{tpu_custom_call.1} parent=5 // pred_fallthru
        _
      %p153 = scmp.le.s32.totalorder 1, %s12
      %p154 = scmp.lt.s32.totalorder %s12, 5
      %p155 = pnand %p153, %p154
      %p156 = pneg %p155
      // Predicated region
      $region29: #{tpu_custom_call.1} parent=5 // pred_check
        _
      $region30: #{tpu_custom_call.1} parent=5 // pred_check_branch
        %158 = sbr.rel (%p155) target = $region32
      $region31: #{tpu_custom_call.1} parent=5 // pred_region
        %s159 = ssub.s32 %s12, 1
        %p160 = scmp.lt.s32.totalorder %s21, 1
        %s161 = scalar_select %p160, %s21, 1
        %s162 = smul.addr %s161, 54
        %s163 = smul.addr %s162, 8
        %s164 = scalar_lea.vmem %s0, %s163
        %p165 = pneg %p50
        %p166 = pneg %p47
        %p167 = pneg %p71
        %p168 = pneg %p68
        %p169 = pneg %p92
        %p170 = pneg %p89
        %p171 = pneg %p120
        %p172 = pneg %p117
        %s173 = sand.u32 %s107, 1
        %s174 = scalar_lea.sflag [#allocation4], %s173
        %s175 = sand.u32 %s107, 1
        %s176 = smul.addr %s175, 128
        %s177 = scalar_lea.vmem [#allocation3], %s176
        %p178 = scmp.lt.s32.totalorder %s21, 1
        %s179 = scalar_select %p178, %s21, 1
        %s180 = smul.addr %s179, 54
        %s181 = smul.addr %s180, 8
        %s182 = scalar_lea.vmem %s0, %s181
        %s183 = smul.u32 8, %s22
        %s184 = smul.u32 %s22, 8
        %185 = vst [vmem:[#allocation2] sm:$0xff] 0.0
        %186 = vst [vmem:[#allocation2 + $0x8] sm:$0xff] 0.0
        %187 = vst [vmem:[#allocation2 + $0x10] sm:$0xff] 0.0
        %188 = vst [vmem:[#allocation2 + $0x18] sm:$0xff] 0.0
        %189 = vst [vmem:[#allocation2 + $0x20] sm:$0xff] 0.0
        %190 = vst [vmem:[#allocation2 + $0x28] sm:$0xff] 0.0
        %191 = vst [vmem:[#allocation2 + $0x30] sm:$0xff] 0.0
        %192 = vst [vmem:[#allocation2 + $0x38] sm:$0xff] 0.0
        %193 = vst [vmem:[#allocation2 + $0x40] sm:$0xff] 0.0
        %194 = vst [vmem:[#allocation2 + $0x48] sm:$0xff] 0.0
        %195 = vst [vmem:[#allocation2 + $0x50] sm:$0xff] 0.0
        %196 = vst [vmem:[#allocation2 + $0x58] sm:$0xff] 0.0
        %197 = vst [vmem:[#allocation2 + $0x60] sm:$0xff] 0.0
        %198 = vst [vmem:[#allocation2 + $0x68] sm:$0xff] 0.0
        %199 = vst [vmem:[#allocation2 + $0x70] sm:$0xff] 0.0
        %200 = vst [vmem:[#allocation2 + $0x78] sm:$0xff] 0.0
        %201 = vst [vmem:[#allocation2 + $0x80] sm:$0xff] 0.0
        %202 = vst [vmem:[#allocation2 + $0x88] sm:$0xff] 0.0
        %203 = vst [vmem:[#allocation2 + $0x90] sm:$0xff] 0.0
        %204 = vst [vmem:[#allocation2 + $0x98] sm:$0xff] 0.0
        %205 = vst [vmem:[#allocation2 + $0xa0] sm:$0xff] 0.0
        %206 = vst [vmem:[#allocation2 + $0xa8] sm:$0xff] 0.0
        %207 = vst [vmem:[#allocation2 + $0xb0] sm:$0xff] 0.0
        %208 = vst [vmem:[#allocation2 + $0xb8] sm:$0xff] 0.0
        %s209 = smul.u32 %s184, 24
        %s210 = scalar_lea.vmem %s182, %s209
        %v211 = vld [vmem:[%s210] sm:$0xff]
        %v212 = vld [vmem:[%s210 + $0x8] sm:$0xff]
        %v213 = vld [vmem:[%s210 + $0x10] sm:$0xff]
        %v214 = vld [vmem:[%s210 + $0x18] sm:$0xff]
        %v215 = vld [vmem:[%s210 + $0x20] sm:$0xff]
        %v216 = vld [vmem:[%s210 + $0x28] sm:$0xff]
        %v217 = vld [vmem:[%s210 + $0x30] sm:$0xff]
        %v218 = vld [vmem:[%s210 + $0x38] sm:$0xff]
        %v219 = vld [vmem:[%s210 + $0x40] sm:$0xff]
        %v220 = vld [vmem:[%s210 + $0x48] sm:$0xff]
        %v221 = vld [vmem:[%s210 + $0x50] sm:$0xff]
        %v222 = vld [vmem:[%s210 + $0x58] sm:$0xff]
        %v223 = vld [vmem:[%s210 + $0x60] sm:$0xff]
        %v224 = vld [vmem:[%s210 + $0x68] sm:$0xff]
        %v225 = vld [vmem:[%s210 + $0x70] sm:$0xff]
        %v226 = vld [vmem:[%s210 + $0x78] sm:$0xff]
        %v227 = vld [vmem:[%s210 + $0x80] sm:$0xff]
        %v228 = vld [vmem:[%s210 + $0x88] sm:$0xff]
        %v229 = vld [vmem:[%s210 + $0x90] sm:$0xff]
        %v230 = vld [vmem:[%s210 + $0x98] sm:$0xff]
        %v231 = vld [vmem:[%s210 + $0xa0] sm:$0xff]
        %v232 = vld [vmem:[%s210 + $0xa8] sm:$0xff]
        %v233 = vld [vmem:[%s210 + $0xb0] sm:$0xff]
        %v234 = vld [vmem:[%s210 + $0xb8] sm:$0xff]
        %v235 = vld [vmem:[#allocation2] sm:$0xff]
        %v236 = vld [vmem:[#allocation2 + $0x8] sm:$0xff]
        %v237 = vld [vmem:[#allocation2 + $0x10] sm:$0xff]
        %v238 = vld [vmem:[#allocation2 + $0x18] sm:$0xff]
        %v239 = vld [vmem:[#allocation2 + $0x20] sm:$0xff]
        %v240 = vld [vmem:[#allocation2 + $0x28] sm:$0xff]
        %v241 = vld [vmem:[#allocation2 + $0x30] sm:$0xff]
        %v242 = vld [vmem:[#allocation2 + $0x38] sm:$0xff]
        %v243 = vld [vmem:[#allocation2 + $0x40] sm:$0xff]
        %v244 = vld [vmem:[#allocation2 + $0x48] sm:$0xff]
        %v245 = vld [vmem:[#allocation2 + $0x50] sm:$0xff]
        %v246 = vld [vmem:[#allocation2 + $0x58] sm:$0xff]
        %v247 = vld [vmem:[#allocation2 + $0x60] sm:$0xff]
        %v248 = vld [vmem:[#allocation2 + $0x68] sm:$0xff]
        %v249 = vld [vmem:[#allocation2 + $0x70] sm:$0xff]
        %v250 = vld [vmem:[#allocation2 + $0x78] sm:$0xff]
        %v251 = vld [vmem:[#allocation2 + $0x80] sm:$0xff]
        %v252 = vld [vmem:[#allocation2 + $0x88] sm:$0xff]
        %v253 = vld [vmem:[#allocation2 + $0x90] sm:$0xff]
        %v254 = vld [vmem:[#allocation2 + $0x98] sm:$0xff]
        %v255 = vld [vmem:[#allocation2 + $0xa0] sm:$0xff]
        %v256 = vld [vmem:[#allocation2 + $0xa8] sm:$0xff]
        %v257 = vld [vmem:[#allocation2 + $0xb0] sm:$0xff]
        %v258 = vld [vmem:[#allocation2 + $0xb8] sm:$0xff]
        %v259 = vld [vmem:[%s1] sm:$0xf]
        %vm260 = vcmask 31744
        %v262 = vsel %vm260, %v211, 0
        %v265 = vsel %vm260, %v212, 0
        %v268 = vsel %vm260, %v213, 0
        %v271 = vsel %vm260, %v214, 0
        %v274 = vsel %vm260, %v215, 0
        %v277 = vsel %vm260, %v216, 0
        %v280 = vsel %vm260, %v217, 0
        %v283 = vsel %vm260, %v218, 0
        %v286 = vsel %vm260, %v219, 0
        %v289 = vsel %vm260, %v220, 0
        %v292 = vsel %vm260, %v221, 0
        %v295 = vsel %vm260, %v222, 0
        %v298 = vsel %vm260, %v223, 0
        %v301 = vsel %vm260, %v224, 0
        %v304 = vsel %vm260, %v225, 0
        %v307 = vsel %vm260, %v226, 0
        %v310 = vsel %vm260, %v227, 0
        %v313 = vsel %vm260, %v228, 0
        %v316 = vsel %vm260, %v229, 0
        %v319 = vsel %vm260, %v230, 0
        %v322 = vsel %vm260, %v231, 0
        %v325 = vsel %vm260, %v232, 0
        %v328 = vsel %vm260, %v233, 0
        %v331 = vsel %vm260, %v234, 0
        %vm333 = vcmask 1043456
        %v335 = vsel %vm333, %v259, 0
        %337 = vmatpush.msra.mxu0 0.0
        %338 = vmatpush.msra.mxu0 0.0
        %339 = vmatpush.msra.mxu0 0.0
        %340 = vmatpush.msra.mxu0 0.0
        %341 = vmatpush.msra.mxu0 0.0
        %342 = vmatpush.msra.mxu0 0.0
        %343 = vmatpush.msra.mxu0 0.0
        %344 = vmatpush.msra.mxu0 0.0
        %345 = vmatpush.msra.mxu0 0.0
        %346 = vmatpush.msra.mxu0 0.0
        %347 = vmatpush.msra.mxu0 0.0
        %348 = vmatpush.msra.mxu0 0.0
        %349 = vmatpush.msra.mxu0 0.0
        %350 = vmatpush.msra.mxu0 0.0
        %351 = vmatpush.msra.mxu0 0.0
        %352 = vmatpush.msra.mxu0 %v335
        %353 = vmatmul.f32.gmra.mxu0 %v262
        %v354 = vpop.f32.mrf.mxu0
        %v355 = vadd.f32 0.0, %v354
        %356 = vmatmul.f32.gmra.mxu0 %v265
        %v357 = vpop.f32.mrf.mxu0
        %v358 = vadd.f32 0.0, %v357
        %359 = vmatmul.f32.gmra.mxu0 %v268
        %v360 = vpop.f32.mrf.mxu0
        %v361 = vadd.f32 0.0, %v360
        %362 = vmatmul.f32.gmra.mxu0 %v271
        %v363 = vpop.f32.mrf.mxu0
        %v364 = vadd.f32 0.0, %v363
        %365 = vmatmul.f32.gmra.mxu0 %v274
        %v366 = vpop.f32.mrf.mxu0
        %v367 = vadd.f32 0.0, %v366
        %368 = vmatmul.f32.gmra.mxu0 %v277
        %v369 = vpop.f32.mrf.mxu0
        %v370 = vadd.f32 0.0, %v369
        %371 = vmatmul.f32.gmra.mxu0 %v280
        %v372 = vpop.f32.mrf.mxu0
        %v373 = vadd.f32 0.0, %v372
        %374 = vmatmul.f32.gmra.mxu0 %v283
        %v375 = vpop.f32.mrf.mxu0
        %v376 = vadd.f32 0.0, %v375
        %377 = vmatmul.f32.gmra.mxu0 %v286
        %v378 = vpop.f32.mrf.mxu0
        %v379 = vadd.f32 0.0, %v378
        %380 = vmatmul.f32.gmra.mxu0 %v289
        %v381 = vpop.f32.mrf.mxu0
        %v382 = vadd.f32 0.0, %v381
        %383 = vmatmul.f32.gmra.mxu0 %v292
        %v384 = vpop.f32.mrf.mxu0
        %v385 = vadd.f32 0.0, %v384
        %386 = vmatmul.f32.gmra.mxu0 %v295
        %v387 = vpop.f32.mrf.mxu0
        %v388 = vadd.f32 0.0, %v387
        %389 = vmatmul.f32.gmra.mxu0 %v298
        %v390 = vpop.f32.mrf.mxu0
        %v391 = vadd.f32 0.0, %v390
        %392 = vmatmul.f32.gmra.mxu0 %v301
        %v393 = vpop.f32.mrf.mxu0
        %v394 = vadd.f32 0.0, %v393
        %395 = vmatmul.f32.gmra.mxu0 %v304
        %v396 = vpop.f32.mrf.mxu0
        %v397 = vadd.f32 0.0, %v396
        %398 = vmatmul.f32.gmra.mxu0 %v307
        %v399 = vpop.f32.mrf.mxu0
        %v400 = vadd.f32 0.0, %v399
        %401 = vmatmul.f32.gmra.mxu0 %v310
        %v402 = vpop.f32.mrf.mxu0
        %v403 = vadd.f32 0.0, %v402
        %404 = vmatmul.f32.gmra.mxu0 %v313
        %v405 = vpop.f32.mrf.mxu0
        %v406 = vadd.f32 0.0, %v405
        %407 = vmatmul.f32.gmra.mxu0 %v316
        %v408 = vpop.f32.mrf.mxu0
        %v409 = vadd.f32 0.0, %v408
        %410 = vmatmul.f32.gmra.mxu0 %v319
        %v411 = vpop.f32.mrf.mxu0
        %v412 = vadd.f32 0.0, %v411
        %413 = vmatmul.f32.gmra.mxu0 %v322
        %v414 = vpop.f32.mrf.mxu0
        %v415 = vadd.f32 0.0, %v414
        %416 = vmatmul.f32.gmra.mxu0 %v325
        %v417 = vpop.f32.mrf.mxu0
        %v418 = vadd.f32 0.0, %v417
        %419 = vmatmul.f32.gmra.mxu0 %v328
        %v420 = vpop.f32.mrf.mxu0
        %v421 = vadd.f32 0.0, %v420
        %422 = vmatmul.f32.gmra.mxu0 %v331
        %v423 = vpop.f32.mrf.mxu0
        %v424 = vadd.f32 0.0, %v423
        %425 = vdwg.mxu0
        %v426 = vadd.f32 %v235, %v355
        %v427 = vadd.f32 %v236, %v358
        %v428 = vadd.f32 %v237, %v361
        %v429 = vadd.f32 %v238, %v364
        %v430 = vadd.f32 %v239, %v367
        %v431 = vadd.f32 %v240, %v370
        %v432 = vadd.f32 %v241, %v373
        %v433 = vadd.f32 %v242, %v376
        %v434 = vadd.f32 %v243, %v379
        %v435 = vadd.f32 %v244, %v382
        %v436 = vadd.f32 %v245, %v385
        %v437 = vadd.f32 %v246, %v388
        %v438 = vadd.f32 %v247, %v391
        %v439 = vadd.f32 %v248, %v394
        %v440 = vadd.f32 %v249, %v397
        %v441 = vadd.f32 %v250, %v400
        %v442 = vadd.f32 %v251, %v403
        %v443 = vadd.f32 %v252, %v406
        %v444 = vadd.f32 %v253, %v409
        %v445 = vadd.f32 %v254, %v412
        %v446 = vadd.f32 %v255, %v415
        %v447 = vadd.f32 %v256, %v418
        %v448 = vadd.f32 %v257, %v421
        %v449 = vadd.f32 %v258, %v424
        %450 = vst [vmem:[#allocation2] sm:$0xff] %v426
        %451 = vst [vmem:[#allocation2 + $0x8] sm:$0xff] %v427
        %452 = vst [vmem:[#allocation2 + $0x10] sm:$0xff] %v428
        %453 = vst [vmem:[#allocation2 + $0x18] sm:$0xff] %v429
        %454 = vst [vmem:[#allocation2 + $0x20] sm:$0xff] %v430
        %455 = vst [vmem:[#allocation2 + $0x28] sm:$0xff] %v431
        %456 = vst [vmem:[#allocation2 + $0x30] sm:$0xff] %v432
        %457 = vst [vmem:[#allocation2 + $0x38] sm:$0xff] %v433
        %458 = vst [vmem:[#allocation2 + $0x40] sm:$0xff] %v434
        %459 = vst [vmem:[#allocation2 + $0x48] sm:$0xff] %v435
        %460 = vst [vmem:[#allocation2 + $0x50] sm:$0xff] %v436
        %461 = vst [vmem:[#allocation2 + $0x58] sm:$0xff] %v437
        %462 = vst [vmem:[#allocation2 + $0x60] sm:$0xff] %v438
        %463 = vst [vmem:[#allocation2 + $0x68] sm:$0xff] %v439
        %464 = vst [vmem:[#allocation2 + $0x70] sm:$0xff] %v440
        %465 = vst [vmem:[#allocation2 + $0x78] sm:$0xff] %v441
        %466 = vst [vmem:[#allocation2 + $0x80] sm:$0xff] %v442
        %467 = vst [vmem:[#allocation2 + $0x88] sm:$0xff] %v443
        %468 = vst [vmem:[#allocation2 + $0x90] sm:$0xff] %v444
        %469 = vst [vmem:[#allocation2 + $0x98] sm:$0xff] %v445
        %470 = vst [vmem:[#allocation2 + $0xa0] sm:$0xff] %v446
        %471 = vst [vmem:[#allocation2 + $0xa8] sm:$0xff] %v447
        %472 = vst [vmem:[#allocation2 + $0xb0] sm:$0xff] %v448
        %473 = vst [vmem:[#allocation2 + $0xb8] sm:$0xff] %v449
        %v474 = vrot.slane %v211, 1
        %v475 = vrot.slane %v212, 1
        %v476 = vrot.slane %v213, 1
        %v477 = vrot.slane %v214, 1
        %v478 = vrot.slane %v215, 1
        %v479 = vrot.slane %v216, 1
        %v480 = vrot.slane %v217, 1
        %v481 = vrot.slane %v218, 1
        %v482 = vrot.slane %v219, 1
        %v483 = vrot.slane %v220, 1
        %v484 = vrot.slane %v221, 1
        %v485 = vrot.slane %v222, 1
        %v486 = vrot.slane %v223, 1
        %v487 = vrot.slane %v224, 1
        %v488 = vrot.slane %v225, 1
        %v489 = vrot.slane %v226, 1
        %v490 = vrot.slane %v227, 1
        %v491 = vrot.slane %v228, 1
        %v492 = vrot.slane %v229, 1
        %v493 = vrot.slane %v230, 1
        %v494 = vrot.slane %v231, 1
        %v495 = vrot.slane %v232, 1
        %v496 = vrot.slane %v233, 1
        %v497 = vrot.slane %v234, 1
        %v498 = vlaneseq
        %v499 = vshrl.u32 %v498, 7
        %vm500 = vcmp.lt.s32.totalorder %v499, 7
        %v501 = vsel %vm500, %v496, %v497
        %v502 = vsel %vm500, %v495, %v496
        %v503 = vsel %vm500, %v494, %v495
        %v504 = vsel %vm500, %v493, %v494
        %v505 = vsel %vm500, %v492, %v493
        %v506 = vsel %vm500, %v491, %v492
        %v507 = vsel %vm500, %v490, %v491
        %v508 = vsel %vm500, %v489, %v490
        %v509 = vsel %vm500, %v488, %v489
        %v510 = vsel %vm500, %v487, %v488
        %v511 = vsel %vm500, %v486, %v487
        %v512 = vsel %vm500, %v485, %v486
        %v513 = vsel %vm500, %v484, %v485
        %v514 = vsel %vm500, %v483, %v484
        %v515 = vsel %vm500, %v482, %v483
        %v516 = vsel %vm500, %v481, %v482
        %v517 = vsel %vm500, %v480, %v481
        %v518 = vsel %vm500, %v479, %v480
        %v519 = vsel %vm500, %v478, %v479
        %v520 = vsel %vm500, %v477, %v478
        %v521 = vsel %vm500, %v476, %v477
        %v522 = vsel %vm500, %v475, %v476
        %v523 = vsel %vm500, %v474, %v475
        %v524 = vsel %vm500, %v497, %v474
        %v525 = vld [vmem:[#allocation2] sm:$0xff]
        %v526 = vld [vmem:[#allocation2 + $0x8] sm:$0xff]
        %v527 = vld [vmem:[#allocation2 + $0x10] sm:$0xff]
        %v528 = vld [vmem:[#allocation2 + $0x18] sm:$0xff]
        %v529 = vld [vmem:[#allocation2 + $0x20] sm:$0xff]
        %v530 = vld [vmem:[#allocation2 + $0x28] sm:$0xff]
        %v531 = vld [vmem:[#allocation2 + $0x30] sm:$0xff]
        %v532 = vld [vmem:[#allocation2 + $0x38] sm:$0xff]
        %v533 = vld [vmem:[#allocation2 + $0x40] sm:$0xff]
        %v534 = vld [vmem:[#allocation2 + $0x48] sm:$0xff]
        %v535 = vld [vmem:[#allocation2 + $0x50] sm:$0xff]
        %v536 = vld [vmem:[#allocation2 + $0x58] sm:$0xff]
        %v537 = vld [vmem:[#allocation2 + $0x60] sm:$0xff]
        %v538 = vld [vmem:[#allocation2 + $0x68] sm:$0xff]
        %v539 = vld [vmem:[#allocation2 + $0x70] sm:$0xff]
        %v540 = vld [vmem:[#allocation2 + $0x78] sm:$0xff]
        %v541 = vld [vmem:[#allocation2 + $0x80] sm:$0xff]
        %v542 = vld [vmem:[#allocation2 + $0x88] sm:$0xff]
        %v543 = vld [vmem:[#allocation2 + $0x90] sm:$0xff]
        %v544 = vld [vmem:[#allocation2 + $0x98] sm:$0xff]
        %v545 = vld [vmem:[#allocation2 + $0xa0] sm:$0xff]
        %v546 = vld [vmem:[#allocation2 + $0xa8] sm:$0xff]
        %v547 = vld [vmem:[#allocation2 + $0xb0] sm:$0xff]
        %v548 = vld [vmem:[#allocation2 + $0xb8] sm:$0xff]
        %s549 = scalar_lea.vmem %s1, 4
        %v550 = vld [vmem:[%s549] sm:$0xf]
        %v552 = vsel %vm260, %v523, 0
        %v555 = vsel %vm260, %v522, 0
        %v558 = vsel %vm260, %v521, 0
        %v561 = vsel %vm260, %v520, 0
        %v564 = vsel %vm260, %v519, 0
        %v567 = vsel %vm260, %v518, 0
        %v570 = vsel %vm260, %v517, 0
        %v573 = vsel %vm260, %v516, 0
        %v576 = vsel %vm260, %v515, 0
        %v579 = vsel %vm260, %v514, 0
        %v582 = vsel %vm260, %v513, 0
        %v585 = vsel %vm260, %v512, 0
        %v588 = vsel %vm260, %v511, 0
        %v591 = vsel %vm260, %v510, 0
        %v594 = vsel %vm260, %v509, 0
        %v597 = vsel %vm260, %v508, 0
        %v600 = vsel %vm260, %v507, 0
        %v603 = vsel %vm260, %v506, 0
        %v606 = vsel %vm260, %v505, 0
        %v609 = vsel %vm260, %v504, 0
        %v612 = vsel %vm260, %v503, 0
        %v615 = vsel %vm260, %v502, 0
        %v618 = vsel %vm260, %v501, 0
        %v621 = vsel %vm260, %v524, 0
        %v624 = vsel %vm333, %v550, 0
        %626 = vmatpush.msra.mxu0 0.0
        %627 = vmatpush.msra.mxu0 0.0
        %628 = vmatpush.msra.mxu0 0.0
        %629 = vmatpush.msra.mxu0 0.0
        %630 = vmatpush.msra.mxu0 0.0
        %631 = vmatpush.msra.mxu0 0.0
        %632 = vmatpush.msra.mxu0 0.0
        %633 = vmatpush.msra.mxu0 0.0
        %634 = vmatpush.msra.mxu0 0.0
        %635 = vmatpush.msra.mxu0 0.0
        %636 = vmatpush.msra.mxu0 0.0
        %637 = vmatpush.msra.mxu0 0.0
        %638 = vmatpush.msra.mxu0 0.0
        %639 = vmatpush.msra.mxu0 0.0
        %640 = vmatpush.msra.mxu0 0.0
        %641 = vmatpush.msra.mxu0 %v624
        %642 = vmatmul.f32.gmra.mxu0 %v552
        %v643 = vpop.f32.mrf.mxu0
        %v644 = vadd.f32 0.0, %v643
        %645 = vmatmul.f32.gmra.mxu0 %v555
        %v646 = vpop.f32.mrf.mxu0
        %v647 = vadd.f32 0.0, %v646
        %648 = vmatmul.f32.gmra.mxu0 %v558
        %v649 = vpop.f32.mrf.mxu0
        %v650 = vadd.f32 0.0, %v649
        %651 = vmatmul.f32.gmra.mxu0 %v561
        %v652 = vpop.f32.mrf.mxu0
        %v653 = vadd.f32 0.0, %v652
        %654 = vmatmul.f32.gmra.mxu0 %v564
        %v655 = vpop.f32.mrf.mxu0
        %v656 = vadd.f32 0.0, %v655
        %657 = vmatmul.f32.gmra.mxu0 %v567
        %v658 = vpop.f32.mrf.mxu0
        %v659 = vadd.f32 0.0, %v658
        %660 = vmatmul.f32.gmra.mxu0 %v570
        %v661 = vpop.f32.mrf.mxu0
        %v662 = vadd.f32 0.0, %v661
        %663 = vmatmul.f32.gmra.mxu0 %v573
        %v664 = vpop.f32.mrf.mxu0
        %v665 = vadd.f32 0.0, %v664
        %666 = vmatmul.f32.gmra.mxu0 %v576
        %v667 = vpop.f32.mrf.mxu0
        %v668 = vadd.f32 0.0, %v667
        %669 = vmatmul.f32.gmra.mxu0 %v579
        %v670 = vpop.f32.mrf.mxu0
        %v671 = vadd.f32 0.0, %v670
        %672 = vmatmul.f32.gmra.mxu0 %v582
        %v673 = vpop.f32.mrf.mxu0
        %v674 = vadd.f32 0.0, %v673
        %675 = vmatmul.f32.gmra.mxu0 %v585
        %v676 = vpop.f32.mrf.mxu0
        %v677 = vadd.f32 0.0, %v676
        %678 = vmatmul.f32.gmra.mxu0 %v588
        %v679 = vpop.f32.mrf.mxu0
        %v680 = vadd.f32 0.0, %v679
        %681 = vmatmul.f32.gmra.mxu0 %v591
        %v682 = vpop.f32.mrf.mxu0
        %v683 = vadd.f32 0.0, %v682
        %684 = vmatmul.f32.gmra.mxu0 %v594
        %v685 = vpop.f32.mrf.mxu0
        %v686 = vadd.f32 0.0, %v685
        %687 = vmatmul.f32.gmra.mxu0 %v597
        %v688 = vpop.f32.mrf.mxu0
        %v689 = vadd.f32 0.0, %v688
        %690 = vmatmul.f32.gmra.mxu0 %v600
        %v691 = vpop.f32.mrf.mxu0
        %v692 = vadd.f32 0.0, %v691
        %693 = vmatmul.f32.gmra.mxu0 %v603
        %v694 = vpop.f32.mrf.mxu0
        %v695 = vadd.f32 0.0, %v694
        %696 = vmatmul.f32.gmra.mxu0 %v606
        %v697 = vpop.f32.mrf.mxu0
        %v698 = vadd.f32 0.0, %v697
        %699 = vmatmul.f32.gmra.mxu0 %v609
        %v700 = vpop.f32.mrf.mxu0
        %v701 = vadd.f32 0.0, %v700
        %702 = vmatmul.f32.gmra.mxu0 %v612
        %v703 = vpop.f32.mrf.mxu0
        %v704 = vadd.f32 0.0, %v703
        %705 = vmatmul.f32.gmra.mxu0 %v615
        %v706 = vpop.f32.mrf.mxu0
        %v707 = vadd.f32 0.0, %v706
        %708 = vmatmul.f32.gmra.mxu0 %v618
        %v709 = vpop.f32.mrf.mxu0
        %v710 = vadd.f32 0.0, %v709
        %711 = vmatmul.f32.gmra.mxu0 %v621
        %v712 = vpop.f32.mrf.mxu0
        %v713 = vadd.f32 0.0, %v712
        %714 = vdwg.mxu0
        %v715 = vadd.f32 %v525, %v644
        %v716 = vadd.f32 %v526, %v647
        %v717 = vadd.f32 %v527, %v650
        %v718 = vadd.f32 %v528, %v653
        %v719 = vadd.f32 %v529, %v656
        %v720 = vadd.f32 %v530, %v659
        %v721 = vadd.f32 %v531, %v662
        %v722 = vadd.f32 %v532, %v665
        %v723 = vadd.f32 %v533, %v668
        %v724 = vadd.f32 %v534, %v671
        %v725 = vadd.f32 %v535, %v674
        %v726 = vadd.f32 %v536, %v677
        %v727 = vadd.f32 %v537, %v680
        %v728 = vadd.f32 %v538, %v683
        %v729 = vadd.f32 %v539, %v686
        %v730 = vadd.f32 %v540, %v689
        %v731 = vadd.f32 %v541, %v692
        %v732 = vadd.f32 %v542, %v695
        %v733 = vadd.f32 %v543, %v698
        %v734 = vadd.f32 %v544, %v701
        %v735 = vadd.f32 %v545, %v704
        %v736 = vadd.f32 %v546, %v707
        %v737 = vadd.f32 %v547, %v710
        %v738 = vadd.f32 %v548, %v713
        %739 = vst [vmem:[#allocation2] sm:$0xff] %v715
        %740 = vst [vmem:[#allocation2 + $0x8] sm:$0xff] %v716
        %741 = vst [vmem:[#allocation2 + $0x10] sm:$0xff] %v717
        %742 = vst [vmem:[#allocation2 + $0x18] sm:$0xff] %v718
        %743 = vst [vmem:[#allocation2 + $0x20] sm:$0xff] %v719
        %744 = vst [vmem:[#allocation2 + $0x28] sm:$0xff] %v720
        %745 = vst [vmem:[#allocation2 + $0x30] sm:$0xff] %v721
        %746 = vst [vmem:[#allocation2 + $0x38] sm:$0xff] %v722
        %747 = vst [vmem:[#allocation2 + $0x40] sm:$0xff] %v723
        %748 = vst [vmem:[#allocation2 + $0x48] sm:$0xff] %v724
        %749 = vst [vmem:[#allocation2 + $0x50] sm:$0xff] %v725
        %750 = vst [vmem:[#allocation2 + $0x58] sm:$0xff] %v726
        %751 = vst [vmem:[#allocation2 + $0x60] sm:$0xff] %v727
        %752 = vst [vmem:[#allocation2 + $0x68] sm:$0xff] %v728
        %753 = vst [vmem:[#allocation2 + $0x70] sm:$0xff] %v729
        %754 = vst [vmem:[#allocation2 + $0x78] sm:$0xff] %v730
        %755 = vst [vmem:[#allocation2 + $0x80] sm:$0xff] %v731
        %756 = vst [vmem:[#allocation2 + $0x88] sm:$0xff] %v732
        %757 = vst [vmem:[#allocation2 + $0x90] sm:$0xff] %v733
        %758 = vst [vmem:[#allocation2 + $0x98] sm:$0xff] %v734
        %759 = vst [vmem:[#allocation2 + $0xa0] sm:$0xff] %v735
        %760 = vst [vmem:[#allocation2 + $0xa8] sm:$0xff] %v736
        %761 = vst [vmem:[#allocation2 + $0xb0] sm:$0xff] %v737
        %762 = vst [vmem:[#allocation2 + $0xb8] sm:$0xff] %v738
        %v763 = vrot.slane %v211, 2
        %v764 = vrot.slane %v212, 2
        %v765 = vrot.slane %v213, 2
        %v766 = vrot.slane %v214, 2
        %v767 = vrot.slane %v215, 2
        %v768 = vrot.slane %v216, 2
        %v769 = vrot.slane %v217, 2
        %v770 = vrot.slane %v218, 2
        %v771 = vrot.slane %v219, 2
        %v772 = vrot.slane %v220, 2
        %v773 = vrot.slane %v221, 2
        %v774 = vrot.slane %v222, 2
        %v775 = vrot.slane %v223, 2
        %v776 = vrot.slane %v224, 2
        %v777 = vrot.slane %v225, 2
        %v778 = vrot.slane %v226, 2
        %v779 = vrot.slane %v227, 2
        %v780 = vrot.slane %v228, 2
        %v781 = vrot.slane %v229, 2
        %v782 = vrot.slane %v230, 2
        %v783 = vrot.slane %v231, 2
        %v784 = vrot.slane %v232, 2
        %v785 = vrot.slane %v233, 2
        %v786 = vrot.slane %v234, 2
        %vm787 = vcmp.lt.s32.totalorder %v499, 6
        %v788 = vsel %vm787, %v785, %v786
        %v789 = vsel %vm787, %v784, %v785
        %v790 = vsel %vm787, %v783, %v784
        %v791 = vsel %vm787, %v782, %v783
        %v792 = vsel %vm787, %v781, %v782
        %v793 = vsel %vm787, %v780, %v781
        %v794 = vsel %vm787, %v779, %v780
        %v795 = vsel %vm787, %v778, %v779
        %v796 = vsel %vm787, %v777, %v778
        %v797 = vsel %vm787, %v776, %v777
        %v798 = vsel %vm787, %v775, %v776
        %v799 = vsel %vm787, %v774, %v775
        %v800 = vsel %vm787, %v773, %v774
        %v801 = vsel %vm787, %v772, %v773
        %v802 = vsel %vm787, %v771, %v772
        %v803 = vsel %vm787, %v770, %v771
        %v804 = vsel %vm787, %v769, %v770
        %v805 = vsel %vm787, %v768, %v769
        %v806 = vsel %vm787, %v767, %v768
        %v807 = vsel %vm787, %v766, %v767
        %v808 = vsel %vm787, %v765, %v766
        %v809 = vsel %vm787, %v764, %v765
        %v810 = vsel %vm787, %v763, %v764
        %v811 = vsel %vm787, %v786, %v763
        %v812 = vld [vmem:[#allocation2] sm:$0xff]
        %v813 = vld [vmem:[#allocation2 + $0x8] sm:$0xff]
        %v814 = vld [vmem:[#allocation2 + $0x10] sm:$0xff]
        %v815 = vld [vmem:[#allocation2 + $0x18] sm:$0xff]
        %v816 = vld [vmem:[#allocation2 + $0x20] sm:$0xff]
        %v817 = vld [vmem:[#allocation2 + $0x28] sm:$0xff]
        %v818 = vld [vmem:[#allocation2 + $0x30] sm:$0xff]
        %v819 = vld [vmem:[#allocation2 + $0x38] sm:$0xff]
        %v820 = vld [vmem:[#allocation2 + $0x40] sm:$0xff]
        %v821 = vld [vmem:[#allocation2 + $0x48] sm:$0xff]
        %v822 = vld [vmem:[#allocation2 + $0x50] sm:$0xff]
        %v823 = vld [vmem:[#allocation2 + $0x58] sm:$0xff]
        %v824 = vld [vmem:[#allocation2 + $0x60] sm:$0xff]
        %v825 = vld [vmem:[#allocation2 + $0x68] sm:$0xff]
        %v826 = vld [vmem:[#allocation2 + $0x70] sm:$0xff]
        %v827 = vld [vmem:[#allocation2 + $0x78] sm:$0xff]
        %v828 = vld [vmem:[#allocation2 + $0x80] sm:$0xff]
        %v829 = vld [vmem:[#allocation2 + $0x88] sm:$0xff]
        %v830 = vld [vmem:[#allocation2 + $0x90] sm:$0xff]
        %v831 = vld [vmem:[#allocation2 + $0x98] sm:$0xff]
        %v832 = vld [vmem:[#allocation2 + $0xa0] sm:$0xff]
        %v833 = vld [vmem:[#allocation2 + $0xa8] sm:$0xff]
        %v834 = vld [vmem:[#allocation2 + $0xb0] sm:$0xff]
        %v835 = vld [vmem:[#allocation2 + $0xb8] sm:$0xff]
        %s836 = scalar_lea.vmem %s1, 8
        %v837 = vld [vmem:[%s836] sm:$0xf]
        %v839 = vsel %vm260, %v810, 0
        %v842 = vsel %vm260, %v809, 0
        %v845 = vsel %vm260, %v808, 0
        %v848 = vsel %vm260, %v807, 0
        %v851 = vsel %vm260, %v806, 0
        %v854 = vsel %vm260, %v805, 0
        %v857 = vsel %vm260, %v804, 0
        %v860 = vsel %vm260, %v803, 0
        %v863 = vsel %vm260, %v802, 0
        %v866 = vsel %vm260, %v801, 0
        %v869 = vsel %vm260, %v800, 0
        %v872 = vsel %vm260, %v799, 0
        %v875 = vsel %vm260, %v798, 0
        %v878 = vsel %vm260, %v797, 0
        %v881 = vsel %vm260, %v796, 0
        %v884 = vsel %vm260, %v795, 0
        %v887 = vsel %vm260, %v794, 0
        %v890 = vsel %vm260, %v793, 0
        %v893 = vsel %vm260, %v792, 0
        %v896 = vsel %vm260, %v791, 0
        %v899 = vsel %vm260, %v790, 0
        %v902 = vsel %vm260, %v789, 0
        %v905 = vsel %vm260, %v788, 0
        %v908 = vsel %vm260, %v811, 0
        %v911 = vsel %vm333, %v837, 0
        %913 = vmatpush.msra.mxu0 0.0
        %914 = vmatpush.msra.mxu0 0.0
        %915 = vmatpush.msra.mxu0 0.0
        %916 = vmatpush.msra.mxu0 0.0
        %917 = vmatpush.msra.mxu0 0.0
        %918 = vmatpush.msra.mxu0 0.0
        %919 = vmatpush.msra.mxu0 0.0
        %920 = vmatpush.msra.mxu0 0.0
        %921 = vmatpush.msra.mxu0 0.0
        %922 = vmatpush.msra.mxu0 0.0
        %923 = vmatpush.msra.mxu0 0.0
        %924 = vmatpush.msra.mxu0 0.0
        %925 = vmatpush.msra.mxu0 0.0
        %926 = vmatpush.msra.mxu0 0.0
        %927 = vmatpush.msra.mxu0 0.0
        %928 = vmatpush.msra.mxu0 %v911
        %929 = vmatmul.f32.gmra.mxu0 %v839
        %v930 = vpop.f32.mrf.mxu0
        %v931 = vadd.f32 0.0, %v930
        %932 = vmatmul.f32.gmra.mxu0 %v842
        %v933 = vpop.f32.mrf.mxu0
        %v934 = vadd.f32 0.0, %v933
        %935 = vmatmul.f32.gmra.mxu0 %v845
        %v936 = vpop.f32.mrf.mxu0
        %v937 = vadd.f32 0.0, %v936
        %938 = vmatmul.f32.gmra.mxu0 %v848
        %v939 = vpop.f32.mrf.mxu0
        %v940 = vadd.f32 0.0, %v939
        %941 = vmatmul.f32.gmra.mxu0 %v851
        %v942 = vpop.f32.mrf.mxu0
        %v943 = vadd.f32 0.0, %v942
        %944 = vmatmul.f32.gmra.mxu0 %v854
        %v945 = vpop.f32.mrf.mxu0
        %v946 = vadd.f32 0.0, %v945
        %947 = vmatmul.f32.gmra.mxu0 %v857
        %v948 = vpop.f32.mrf.mxu0
        %v949 = vadd.f32 0.0, %v948
        %950 = vmatmul.f32.gmra.mxu0 %v860
        %v951 = vpop.f32.mrf.mxu0
        %v952 = vadd.f32 0.0, %v951
        %953 = vmatmul.f32.gmra.mxu0 %v863
        %v954 = vpop.f32.mrf.mxu0
        %v955 = vadd.f32 0.0, %v954
        %956 = vmatmul.f32.gmra.mxu0 %v866
        %v957 = vpop.f32.mrf.mxu0
        %v958 = vadd.f32 0.0, %v957
        %959 = vmatmul.f32.gmra.mxu0 %v869
        %v960 = vpop.f32.mrf.mxu0
        %v961 = vadd.f32 0.0, %v960
        %962 = vmatmul.f32.gmra.mxu0 %v872
        %v963 = vpop.f32.mrf.mxu0
        %v964 = vadd.f32 0.0, %v963
        %965 = vmatmul.f32.gmra.mxu0 %v875
        %v966 = vpop.f32.mrf.mxu0
        %v967 = vadd.f32 0.0, %v966
        %968 = vmatmul.f32.gmra.mxu0 %v878
        %v969 = vpop.f32.mrf.mxu0
        %v970 = vadd.f32 0.0, %v969
        %971 = vmatmul.f32.gmra.mxu0 %v881
        %v972 = vpop.f32.mrf.mxu0
        %v973 = vadd.f32 0.0, %v972
        %974 = vmatmul.f32.gmra.mxu0 %v884
        %v975 = vpop.f32.mrf.mxu0
        %v976 = vadd.f32 0.0, %v975
        %977 = vmatmul.f32.gmra.mxu0 %v887
        %v978 = vpop.f32.mrf.mxu0
        %v979 = vadd.f32 0.0, %v978
        %980 = vmatmul.f32.gmra.mxu0 %v890
        %v981 = vpop.f32.mrf.mxu0
        %v982 = vadd.f32 0.0, %v981
        %983 = vmatmul.f32.gmra.mxu0 %v893
        %v984 = vpop.f32.mrf.mxu0
        %v985 = vadd.f32 0.0, %v984
        %986 = vmatmul.f32.gmra.mxu0 %v896
        %v987 = vpop.f32.mrf.mxu0
        %v988 = vadd.f32 0.0, %v987
        %989 = vmatmul.f32.gmra.mxu0 %v899
        %v990 = vpop.f32.mrf.mxu0
        %v991 = vadd.f32 0.0, %v990
        %992 = vmatmul.f32.gmra.mxu0 %v902
        %v993 = vpop.f32.mrf.mxu0
        %v994 = vadd.f32 0.0, %v993
        %995 = vmatmul.f32.gmra.mxu0 %v905
        %v996 = vpop.f32.mrf.mxu0
        %v997 = vadd.f32 0.0, %v996
        %998 = vmatmul.f32.gmra.mxu0 %v908
        %v999 = vpop.f32.mrf.mxu0
        %v1000 = vadd.f32 0.0, %v999
        %1001 = vdwg.mxu0
        %v1002 = vadd.f32 %v812, %v931
        %v1003 = vadd.f32 %v813, %v934
        %v1004 = vadd.f32 %v814, %v937
        %v1005 = vadd.f32 %v815, %v940
        %v1006 = vadd.f32 %v816, %v943
        %v1007 = vadd.f32 %v817, %v946
        %v1008 = vadd.f32 %v818, %v949
        %v1009 = vadd.f32 %v819, %v952
        %v1010 = vadd.f32 %v820, %v955
        %v1011 = vadd.f32 %v821, %v958
        %v1012 = vadd.f32 %v822, %v961
        %v1013 = vadd.f32 %v823, %v964
        %v1014 = vadd.f32 %v824, %v967
        %v1015 = vadd.f32 %v825, %v970
        %v1016 = vadd.f32 %v826, %v973
        %v1017 = vadd.f32 %v827, %v976
        %v1018 = vadd.f32 %v828, %v979
        %v1019 = vadd.f32 %v829, %v982
        %v1020 = vadd.f32 %v830, %v985
        %v1021 = vadd.f32 %v831, %v988
        %v1022 = vadd.f32 %v832, %v991
        %v1023 = vadd.f32 %v833, %v994
        %v1024 = vadd.f32 %v834, %v997
        %v1025 = vadd.f32 %v835, %v1000
        %1026 = vst [vmem:[#allocation2] sm:$0xff] %v1002
        %1027 = vst [vmem:[#allocation2 + $0x8] sm:$0xff] %v1003
        %1028 = vst [vmem:[#allocation2 + $0x10] sm:$0xff] %v1004
        %1029 = vst [vmem:[#allocation2 + $0x18] sm:$0xff] %v1005
        %1030 = vst [vmem:[#allocation2 + $0x20] sm:$0xff] %v1006
        %1031 = vst [vmem:[#allocation2 + $0x28] sm:$0xff] %v1007
        %1032 = vst [vmem:[#allocation2 + $0x30] sm:$0xff] %v1008
        %1033 = vst [vmem:[#allocation2 + $0x38] sm:$0xff] %v1009
        %1034 = vst [vmem:[#allocation2 + $0x40] sm:$0xff] %v1010
        %1035 = vst [vmem:[#allocation2 + $0x48] sm:$0xff] %v1011
        %1036 = vst [vmem:[#allocation2 + $0x50] sm:$0xff] %v1012
        %1037 = vst [vmem:[#allocation2 + $0x58] sm:$0xff] %v1013
        %1038 = vst [vmem:[#allocation2 + $0x60] sm:$0xff] %v1014
        %1039 = vst [vmem:[#allocation2 + $0x68] sm:$0xff] %v1015
        %1040 = vst [vmem:[#allocation2 + $0x70] sm:$0xff] %v1016
        %1041 = vst [vmem:[#allocation2 + $0x78] sm:$0xff] %v1017
        %1042 = vst [vmem:[#allocation2 + $0x80] sm:$0xff] %v1018
        %1043 = vst [vmem:[#allocation2 + $0x88] sm:$0xff] %v1019
        %1044 = vst [vmem:[#allocation2 + $0x90] sm:$0xff] %v1020
        %1045 = vst [vmem:[#allocation2 + $0x98] sm:$0xff] %v1021
        %1046 = vst [vmem:[#allocation2 + $0xa0] sm:$0xff] %v1022
        %1047 = vst [vmem:[#allocation2 + $0xa8] sm:$0xff] %v1023
        %1048 = vst [vmem:[#allocation2 + $0xb0] sm:$0xff] %v1024
        %1049 = vst [vmem:[#allocation2 + $0xb8] sm:$0xff] %v1025
        %s1050 = sadd.s32 %s184, 1
        %s1051 = smul.u32 %s1050, 24
        %s1052 = scalar_lea.vmem %s182, %s1051
        %v1053 = vld [vmem:[%s1052] sm:$0xff]
        %v1054 = vld [vmem:[%s1052 + $0x8] sm:$0xff]
        %v1055 = vld [vmem:[%s1052 + $0x10] sm:$0xff]
        %v1056 = vld [vmem:[%s1052 + $0x18] sm:$0xff]
        %v1057 = vld [vmem:[%s1052 + $0x20] sm:$0xff]
        %v1058 = vld [vmem:[%s1052 + $0x28] sm:$0xff]
        %v1059 = vld [vmem:[%s1052 + $0x30] sm:$0xff]
        %v1060 = vld [vmem:[%s1052 + $0x38] sm:$0xff]
        %v1061 = vld [vmem:[%s1052 + $0x40] sm:$0xff]
        %v1062 = vld [vmem:[%s1052 + $0x48] sm:$0xff]
        %v1063 = vld [vmem:[%s1052 + $0x50] sm:$0xff]
        %v1064 = vld [vmem:[%s1052 + $0x58] sm:$0xff]
        %v1065 = vld [vmem:[%s1052 + $0x60] sm:$0xff]
        %v1066 = vld [vmem:[%s1052 + $0x68] sm:$0xff]
        %v1067 = vld [vmem:[%s1052 + $0x70] sm:$0xff]
        %v1068 = vld [vmem:[%s1052 + $0x78] sm:$0xff]
        %v1069 = vld [vmem:[%s1052 + $0x80] sm:$0xff]
        %v1070 = vld [vmem:[%s1052 + $0x88] sm:$0xff]
        %v1071 = vld [vmem:[%s1052 + $0x90] sm:$0xff]
        %v1072 = vld [vmem:[%s1052 + $0x98] sm:$0xff]
        %v1073 = vld [vmem:[%s1052 + $0xa0] sm:$0xff]
        %v1074 = vld [vmem:[%s1052 + $0xa8] sm:$0xff]
        %v1075 = vld [vmem:[%s1052 + $0xb0] sm:$0xff]
        %v1076 = vld [vmem:[%s1052 + $0xb8] sm:$0xff]
        %v1077 = vld [vmem:[#allocation2] sm:$0xff]
        %v1078 = vld [vmem:[#allocation2 + $0x8] sm:$0xff]
        %v1079 = vld [vmem:[#allocation2 + $0x10] sm:$0xff]
        %v1080 = vld [vmem:[#allocation2 + $0x18] sm:$0xff]
        %v1081 = vld [vmem:[#allocation2 + $0x20] sm:$0xff]
        %v1082 = vld [vmem:[#allocation2 + $0x28] sm:$0xff]
        %v1083 = vld [vmem:[#allocation2 + $0x30] sm:$0xff]
        %v1084 = vld [vmem:[#allocation2 + $0x38] sm:$0xff]
        %v1085 = vld [vmem:[#allocation2 + $0x40] sm:$0xff]
        %v1086 = vld [vmem:[#allocation2 + $0x48] sm:$0xff]
        %v1087 = vld [vmem:[#allocation2 + $0x50] sm:$0xff]
        %v1088 = vld [vmem:[#allocation2 + $0x58] sm:$0xff]
        %v1089 = vld [vmem:[#allocation2 + $0x60] sm:$0xff]
        %v1090 = vld [vmem:[#allocation2 + $0x68] sm:$0xff]
        %v1091 = vld [vmem:[#allocation2 + $0x70] sm:$0xff]
        %v1092 = vld [vmem:[#allocation2 + $0x78] sm:$0xff]
        %v1093 = vld [vmem:[#allocation2 + $0x80] sm:$0xff]
        %v1094 = vld [vmem:[#allocation2 + $0x88] sm:$0xff]
        %v1095 = vld [vmem:[#allocation2 + $0x90] sm:$0xff]
        %v1096 = vld [vmem:[#allocation2 + $0x98] sm:$0xff]
        %v1097 = vld [vmem:[#allocation2 + $0xa0] sm:$0xff]
        %v1098 = vld [vmem:[#allocation2 + $0xa8] sm:$0xff]
        %v1099 = vld [vmem:[#allocation2 + $0xb0] sm:$0xff]
        %v1100 = vld [vmem:[#allocation2 + $0xb8] sm:$0xff]
        %s1101 = scalar_lea.vmem %s1, 12
        %v1102 = vld [vmem:[%s1101] sm:$0xf]
        %v1104 = vsel %vm260, %v1053, 0
        %v1107 = vsel %vm260, %v1054, 0
        %v1110 = vsel %vm260, %v1055, 0
        %v1113 = vsel %vm260, %v1056, 0
        %v1116 = vsel %vm260, %v1057, 0
        %v1119 = vsel %vm260, %v1058, 0
        %v1122 = vsel %vm260, %v1059, 0
        %v1125 = vsel %vm260, %v1060, 0
        %v1128 = vsel %vm260, %v1061, 0
        %v1131 = vsel %vm260, %v1062, 0
        %v1134 = vsel %vm260, %v1063, 0
        %v1137 = vsel %vm260, %v1064, 0
        %v1140 = vsel %vm260, %v1065, 0
        %v1143 = vsel %vm260, %v1066, 0
        %v1146 = vsel %vm260, %v1067, 0
        %v1149 = vsel %vm260, %v1068, 0
        %v1152 = vsel %vm260, %v1069, 0
        %v1155 = vsel %vm260, %v1070, 0
        %v1158 = vsel %vm260, %v1071, 0
        %v1161 = vsel %vm260, %v1072, 0
        %v1164 = vsel %vm260, %v1073, 0
        %v1167 = vsel %vm260, %v1074, 0
        %v1170 = vsel %vm260, %v1075, 0
        %v1173 = vsel %vm260, %v1076, 0
        %v1176 = vsel %vm333, %v1102, 0
        %1178 = vmatpush.msra.mxu0 0.0
        %1179 = vmatpush.msra.mxu0 0.0
        %1180 = vmatpush.msra.mxu0 0.0
        %1181 = vmatpush.msra.mxu0 0.0
        %1182 = vmatpush.msra.mxu0 0.0
        %1183 = vmatpush.msra.mxu0 0.0
        %1184 = vmatpush.msra.mxu0 0.0
        %1185 = vmatpush.msra.mxu0 0.0
        %1186 = vmatpush.msra.mxu0 0.0
        %1187 = vmatpush.msra.mxu0 0.0
        %1188 = vmatpush.msra.mxu0 0.0
        %1189 = vmatpush.msra.mxu0 0.0
        %1190 = vmatpush.msra.mxu0 0.0
        %1191 = vmatpush.msra.mxu0 0.0
        %1192 = vmatpush.msra.mxu0 0.0
        %1193 = vmatpush.msra.mxu0 %v1176
        %1194 = vmatmul.f32.gmra.mxu0 %v1104
        %v1195 = vpop.f32.mrf.mxu0
        %v1196 = vadd.f32 0.0, %v1195
        %1197 = vmatmul.f32.gmra.mxu0 %v1107
        %v1198 = vpop.f32.mrf.mxu0
        %v1199 = vadd.f32 0.0, %v1198
        %1200 = vmatmul.f32.gmra.mxu0 %v1110
        %v1201 = vpop.f32.mrf.mxu0
        %v1202 = vadd.f32 0.0, %v1201
        %1203 = vmatmul.f32.gmra.mxu0 %v1113
        %v1204 = vpop.f32.mrf.mxu0
        %v1205 = vadd.f32 0.0, %v1204
        %1206 = vmatmul.f32.gmra.mxu0 %v1116
        %v1207 = vpop.f32.mrf.mxu0
        %v1208 = vadd.f32 0.0, %v1207
        %1209 = vmatmul.f32.gmra.mxu0 %v1119
        %v1210 = vpop.f32.mrf.mxu0
        %v1211 = vadd.f32 0.0, %v1210
        %1212 = vmatmul.f32.gmra.mxu0 %v1122
        %v1213 = vpop.f32.mrf.mxu0
        %v1214 = vadd.f32 0.0, %v1213
        %1215 = vmatmul.f32.gmra.mxu0 %v1125
        %v1216 = vpop.f32.mrf.mxu0
        %v1217 = vadd.f32 0.0, %v1216
        %1218 = vmatmul.f32.gmra.mxu0 %v1128
        %v1219 = vpop.f32.mrf.mxu0
        %v1220 = vadd.f32 0.0, %v1219
        %1221 = vmatmul.f32.gmra.mxu0 %v1131
        %v1222 = vpop.f32.mrf.mxu0
        %v1223 = vadd.f32 0.0, %v1222
        %1224 = vmatmul.f32.gmra.mxu0 %v1134
        %v1225 = vpop.f32.mrf.mxu0
        %v1226 = vadd.f32 0.0, %v1225
        %1227 = vmatmul.f32.gmra.mxu0 %v1137
        %v1228 = vpop.f32.mrf.mxu0
        %v1229 = vadd.f32 0.0, %v1228
        %1230 = vmatmul.f32.gmra.mxu0 %v1140
        %v1231 = vpop.f32.mrf.mxu0
        %v1232 = vadd.f32 0.0, %v1231
        %1233 = vmatmul.f32.gmra.mxu0 %v1143
        %v1234 = vpop.f32.mrf.mxu0
        %v1235 = vadd.f32 0.0, %v1234
        %1236 = vmatmul.f32.gmra.mxu0 %v1146
        %v1237 = vpop.f32.mrf.mxu0
        %v1238 = vadd.f32 0.0, %v1237
        %1239 = vmatmul.f32.gmra.mxu0 %v1149
        %v1240 = vpop.f32.mrf.mxu0
        %v1241 = vadd.f32 0.0, %v1240
        %1242 = vmatmul.f32.gmra.mxu0 %v1152
        %v1243 = vpop.f32.mrf.mxu0
        %v1244 = vadd.f32 0.0, %v1243
        %1245 = vmatmul.f32.gmra.mxu0 %v1155
        %v1246 = vpop.f32.mrf.mxu0
        %v1247 = vadd.f32 0.0, %v1246
        %1248 = vmatmul.f32.gmra.mxu0 %v1158
        %v1249 = vpop.f32.mrf.mxu0
        %v1250 = vadd.f32 0.0, %v1249
        %1251 = vmatmul.f32.gmra.mxu0 %v1161
        %v1252 = vpop.f32.mrf.mxu0
        %v1253 = vadd.f32 0.0, %v1252
        %1254 = vmatmul.f32.gmra.mxu0 %v1164
        %v1255 = vpop.f32.mrf.mxu0
        %v1256 = vadd.f32 0.0, %v1255
        %1257 = vmatmul.f32.gmra.mxu0 %v1167
        %v1258 = vpop.f32.mrf.mxu0
        %v1259 = vadd.f32 0.0, %v1258
        %1260 = vmatmul.f32.gmra.mxu0 %v1170
        %v1261 = vpop.f32.mrf.mxu0
        %v1262 = vadd.f32 0.0, %v1261
        %1263 = vmatmul.f32.gmra.mxu0 %v1173
        %v1264 = vpop.f32.mrf.mxu0
        %v1265 = vadd.f32 0.0, %v1264
        %1266 = vdwg.mxu0
        %v1267 = vadd.f32 %v1077, %v1196
        %v1268 = vadd.f32 %v1078, %v1199
        %v1269 = vadd.f32 %v1079, %v1202
        %v1270 = vadd.f32 %v1080, %v1205
        %v1271 = vadd.f32 %v1081, %v1208
        %v1272 = vadd.f32 %v1082, %v1211
        %v1273 = vadd.f32 %v1083, %v1214
        %v1274 = vadd.f32 %v1084, %v1217
        %v1275 = vadd.f32 %v1085, %v1220
        %v1276 = vadd.f32 %v1086, %v1223
        %v1277 = vadd.f32 %v1087, %v1226
        %v1278 = vadd.f32 %v1088, %v1229
        %v1279 = vadd.f32 %v1089, %v1232
        %v1280 = vadd.f32 %v1090, %v1235
        %v1281 = vadd.f32 %v1091, %v1238
        %v1282 = vadd.f32 %v1092, %v1241
        %v1283 = vadd.f32 %v1093, %v1244
        %v1284 = vadd.f32 %v1094, %v1247
        %v1285 = vadd.f32 %v1095, %v1250
        %v1286 = vadd.f32 %v1096, %v1253
        %v1287 = vadd.f32 %v1097, %v1256
        %v1288 = vadd.f32 %v1098, %v1259
        %v1289 = vadd.f32 %v1099, %v1262
        %v1290 = vadd.f32 %v1100, %v1265
        %1291 = vst [vmem:[#allocation2] sm:$0xff] %v1267
        %1292 = vst [vmem:[#allocation2 + $0x8] sm:$0xff] %v1268
        %1293 = vst [vmem:[#allocation2 + $0x10] sm:$0xff] %v1269
        %1294 = vst [vmem:[#allocation2 + $0x18] sm:$0xff] %v1270
        %1295 = vst [vmem:[#allocation2 + $0x20] sm:$0xff] %v1271
        %1296 = vst [vmem:[#allocation2 + $0x28] sm:$0xff] %v1272
        %1297 = vst [vmem:[#allocation2 + $0x30] sm:$0xff] %v1273
        %1298 = vst [vmem:[#allocation2 + $0x38] sm:$0xff] %v1274
        %1299 = vst [vmem:[#allocation2 + $0x40] sm:$0xff] %v1275
        %1300 = vst [vmem:[#allocation2 + $0x48] sm:$0xff] %v1276
        %1301 = vst [vmem:[#allocation2 + $0x50] sm:$0xff] %v1277
        %1302 = vst [vmem:[#allocation2 + $0x58] sm:$0xff] %v1278
        %1303 = vst [vmem:[#allocation2 + $0x60] sm:$0xff] %v1279
        %1304 = vst [vmem:[#allocation2 + $0x68] sm:$0xff] %v1280
        %1305 = vst [vmem:[#allocation2 + $0x70] sm:$0xff] %v1281
        %1306 = vst [vmem:[#allocation2 + $0x78] sm:$0xff] %v1282
        %1307 = vst [vmem:[#allocation2 + $0x80] sm:$0xff] %v1283
        %1308 = vst [vmem:[#allocation2 + $0x88] sm:$0xff] %v1284
        %1309 = vst [vmem:[#allocation2 + $0x90] sm:$0xff] %v1285
        %1310 = vst [vmem:[#allocation2 + $0x98] sm:$0xff] %v1286
        %1311 = vst [vmem:[#allocation2 + $0xa0] sm:$0xff] %v1287
        %1312 = vst [vmem:[#allocation2 + $0xa8] sm:$0xff] %v1288
        %1313 = vst [vmem:[#allocation2 + $0xb0] sm:$0xff] %v1289
        %1314 = vst [vmem:[#allocation2 + $0xb8] sm:$0xff] %v1290
        %v1315 = vrot.slane %v1053, 1
        %v1316 = vrot.slane %v1054, 1
        %v1317 = vrot.slane %v1055, 1
        %v1318 = vrot.slane %v1056, 1
        %v1319 = vrot.slane %v1057, 1
        %v1320 = vrot.slane %v1058, 1
        %v1321 = vrot.slane %v1059, 1
        %v1322 = vrot.slane %v1060, 1
        %v1323 = vrot.slane %v1061, 1
        %v1324 = vrot.slane %v1062, 1
        %v1325 = vrot.slane %v1063, 1
        %v1326 = vrot.slane %v1064, 1
        %v1327 = vrot.slane %v1065, 1
        %v1328 = vrot.slane %v1066, 1
        %v1329 = vrot.slane %v1067, 1
        %v1330 = vrot.slane %v1068, 1
        %v1331 = vrot.slane %v1069, 1
        %v1332 = vrot.slane %v1070, 1
        %v1333 = vrot.slane %v1071, 1
        %v1334 = vrot.slane %v1072, 1
        %v1335 = vrot.slane %v1073, 1
        %v1336 = vrot.slane %v1074, 1
        %v1337 = vrot.slane %v1075, 1
        %v1338 = vrot.slane %v1076, 1
        %v1339 = vsel %vm500, %v1337, %v1338
        %v1340 = vsel %vm500, %v1336, %v1337
        %v1341 = vsel %vm500, %v1335, %v1336
        %v1342 = vsel %vm500, %v1334, %v1335
        %v1343 = vsel %vm500, %v1333, %v1334
        %v1344 = vsel %vm500, %v1332, %v1333
        %v1345 = vsel %vm500, %v1331, %v1332
        %v1346 = vsel %vm500, %v1330, %v1331
        %v1347 = vsel %vm500, %v1329, %v1330
        %v1348 = vsel %vm500, %v1328, %v1329
        %v1349 = vsel %vm500, %v1327, %v1328
        %v1350 = vsel %vm500, %v1326, %v1327
        %v1351 = vsel %vm500, %v1325, %v1326
        %v1352 = vsel %vm500, %v1324, %v1325
        %v1353 = vsel %vm500, %v1323, %v1324
        %v1354 = vsel %vm500, %v1322, %v1323
        %v1355 = vsel %vm500, %v1321, %v1322
        %v1356 = vsel %vm500, %v1320, %v1321
        %v1357 = vsel %vm500, %v1319, %v1320
        %v1358 = vsel %vm500, %v1318, %v1319
        %v1359 = vsel %vm500, %v1317, %v1318
        %v1360 = vsel %vm500, %v1316, %v1317
        %v1361 = vsel %vm500, %v1315, %v1316
        %v1362 = vsel %vm500, %v1338, %v1315
        %v1363 = vld [vmem:[#allocation2] sm:$0xff]
        %v1364 = vld [vmem:[#allocation2 + $0x8] sm:$0xff]
        %v1365 = vld [vmem:[#allocation2 + $0x10] sm:$0xff]
        %v1366 = vld [vmem:[#allocation2 + $0x18] sm:$0xff]
        %v1367 = vld [vmem:[#allocation2 + $0x20] sm:$0xff]
        %v1368 = vld [vmem:[#allocation2 + $0x28] sm:$0xff]
        %v1369 = vld [vmem:[#allocation2 + $0x30] sm:$0xff]
        %v1370 = vld [vmem:[#allocation2 + $0x38] sm:$0xff]
        %v1371 = vld [vmem:[#allocation2 + $0x40] sm:$0xff]
        %v1372 = vld [vmem:[#allocation2 + $0x48] sm:$0xff]
        %v1373 = vld [vmem:[#allocation2 + $0x50] sm:$0xff]
        %v1374 = vld [vmem:[#allocation2 + $0x58] sm:$0xff]
        %v1375 = vld [vmem:[#allocation2 + $0x60] sm:$0xff]
        %v1376 = vld [vmem:[#allocation2 + $0x68] sm:$0xff]
        %v1377 = vld [vmem:[#allocation2 + $0x70] sm:$0xff]
        %v1378 = vld [vmem:[#allocation2 + $0x78] sm:$0xff]
        %v1379 = vld [vmem:[#allocation2 + $0x80] sm:$0xff]
        %v1380 = vld [vmem:[#allocation2 + $0x88] sm:$0xff]
        %v1381 = vld [vmem:[#allocation2 + $0x90] sm:$0xff]
        %v1382 = vld [vmem:[#allocation2 + $0x98] sm:$0xff]
        %v1383 = vld [vmem:[#allocation2 + $0xa0] sm:$0xff]
        %v1384 = vld [vmem:[#allocation2 + $0xa8] sm:$0xff]
        %v1385 = vld [vmem:[#allocation2 + $0xb0] sm:$0xff]
        %v1386 = vld [vmem:[#allocation2 + $0xb8] sm:$0xff]
        %s1387 = scalar_lea.vmem %s1, 16
        %v1388 = vld [vmem:[%s1387] sm:$0xf]
        %v1390 = vsel %vm260, %v1361, 0
        %v1393 = vsel %vm260, %v1360, 0
        %v1396 = vsel %vm260, %v1359, 0
        %v1399 = vsel %vm260, %v1358, 0
        %v1402 = vsel %vm260, %v1357, 0
        %v1405 = vsel %vm260, %v1356, 0
        %v1408 = vsel %vm260, %v1355, 0
        %v1411 = vsel %vm260, %v1354, 0
        %v1414 = vsel %vm260, %v1353, 0
        %v1417 = vsel %vm260, %v1352, 0
        %v1420 = vsel %vm260, %v1351, 0
        %v1423 = vsel %vm260, %v1350, 0
        %v1426 = vsel %vm260, %v1349, 0
        %v1429 = vsel %vm260, %v1348, 0
        %v1432 = vsel %vm260, %v1347, 0
        %v1435 = vsel %vm260, %v1346, 0
        %v1438 = vsel %vm260, %v1345, 0
        %v1441 = vsel %vm260, %v1344, 0
        %v1444 = vsel %vm260, %v1343, 0
        %v1447 = vsel %vm260, %v1342, 0
        %v1450 = vsel %vm260, %v1341, 0
        %v1453 = vsel %vm260, %v1340, 0
        %v1456 = vsel %vm260, %v1339, 0
        %v1459 = vsel %vm260, %v1362, 0
        %v1462 = vsel %vm333, %v1388, 0
        %1464 = vmatpush.msra.mxu0 0.0
        %1465 = vmatpush.msra.mxu0 0.0
        %1466 = vmatpush.msra.mxu0 0.0
        %1467 = vmatpush.msra.mxu0 0.0
        %1468 = vmatpush.msra.mxu0 0.0
        %1469 = vmatpush.msra.mxu0 0.0
        %1470 = vmatpush.msra.mxu0 0.0
        %1471 = vmatpush.msra.mxu0 0.0
        %1472 = vmatpush.msra.mxu0 0.0
        %1473 = vmatpush.msra.mxu0 0.0
        %1474 = vmatpush.msra.mxu0 0.0
        %1475 = vmatpush.msra.mxu0 0.0
        %1476 = vmatpush.msra.mxu0 0.0
        %1477 = vmatpush.msra.mxu0 0.0
        %1478 = vmatpush.msra.mxu0 0.0
        %1479 = vmatpush.msra.mxu0 %v1462
        %1480 = vmatmul.f32.gmra.mxu0 %v1390
        %v1481 = vpop.f32.mrf.mxu0
        %v1482 = vadd.f32 0.0, %v1481
        %1483 = vmatmul.f32.gmra.mxu0 %v1393
        %v1484 = vpop.f32.mrf.mxu0
        %v1485 = vadd.f32 0.0, %v1484
        %1486 = vmatmul.f32.gmra.mxu0 %v1396
        %v1487 = vpop.f32.mrf.mxu0
        %v1488 = vadd.f32 0.0, %v1487
        %1489 = vmatmul.f32.gmra.mxu0 %v1399
        %v1490 = vpop.f32.mrf.mxu0
        %v1491 = vadd.f32 0.0, %v1490
        %1492 = vmatmul.f32.gmra.mxu0 %v1402
        %v1493 = vpop.f32.mrf.mxu0
        %v1494 = vadd.f32 0.0, %v1493
        %1495 = vmatmul.f32.gmra.mxu0 %v1405
        %v1496 = vpop.f32.mrf.mxu0
        %v1497 = vadd.f32 0.0, %v1496
        %1498 = vmatmul.f32.gmra.mxu0 %v1408
        %v1499 = vpop.f32.mrf.mxu0
        %v1500 = vadd.f32 0.0, %v1499
        %1501 = vmatmul.f32.gmra.mxu0 %v1411
        %v1502 = vpop.f32.mrf.mxu0
        %v1503 = vadd.f32 0.0, %v1502
        %1504 = vmatmul.f32.gmra.mxu0 %v1414
        %v1505 = vpop.f32.mrf.mxu0
        %v1506 = vadd.f32 0.0, %v1505
        %1507 = vmatmul.f32.gmra.mxu0 %v1417
        %v1508 = vpop.f32.mrf.mxu0
        %v1509 = vadd.f32 0.0, %v1508
        %1510 = vmatmul.f32.gmra.mxu0 %v1420
        %v1511 = vpop.f32.mrf.mxu0
        %v1512 = vadd.f32 0.0, %v1511
        %1513 = vmatmul.f32.gmra.mxu0 %v1423
        %v1514 = vpop.f32.mrf.mxu0
        %v1515 = vadd.f32 0.0, %v1514
        %1516 = vmatmul.f32.gmra.mxu0 %v1426
        %v1517 = vpop.f32.mrf.mxu0
        %v1518 = vadd.f32 0.0, %v1517
        %1519 = vmatmul.f32.gmra.mxu0 %v1429
        %v1520 = vpop.f32.mrf.mxu0
        %v1521 = vadd.f32 0.0, %v1520
        %1522 = vmatmul.f32.gmra.mxu0 %v1432
        %v1523 = vpop.f32.mrf.mxu0
        %v1524 = vadd.f32 0.0, %v1523
        %1525 = vmatmul.f32.gmra.mxu0 %v1435
        %v1526 = vpop.f32.mrf.mxu0
        %v1527 = vadd.f32 0.0, %v1526
        %1528 = vmatmul.f32.gmra.mxu0 %v1438
        %v1529 = vpop.f32.mrf.mxu0
        %v1530 = vadd.f32 0.0, %v1529
        %1531 = vmatmul.f32.gmra.mxu0 %v1441
        %v1532 = vpop.f32.mrf.mxu0
        %v1533 = vadd.f32 0.0, %v1532
        %1534 = vmatmul.f32.gmra.mxu0 %v1444
        %v1535 = vpop.f32.mrf.mxu0
        %v1536 = vadd.f32 0.0, %v1535
        %1537 = vmatmul.f32.gmra.mxu0 %v1447
        %v1538 = vpop.f32.mrf.mxu0
        %v1539 = vadd.f32 0.0, %v1538
        %1540 = vmatmul.f32.gmra.mxu0 %v1450
        %v1541 = vpop.f32.mrf.mxu0
        %v1542 = vadd.f32 0.0, %v1541
        %1543 = vmatmul.f32.gmra.mxu0 %v1453
        %v1544 = vpop.f32.mrf.mxu0
        %v1545 = vadd.f32 0.0, %v1544
        %1546 = vmatmul.f32.gmra.mxu0 %v1456
        %v1547 = vpop.f32.mrf.mxu0
        %v1548 = vadd.f32 0.0, %v1547
        %1549 = vmatmul.f32.gmra.mxu0 %v1459
        %v1550 = vpop.f32.mrf.mxu0
        %v1551 = vadd.f32 0.0, %v1550
        %1552 = vdwg.mxu0
        %v1553 = vadd.f32 %v1363, %v1482
        %v1554 = vadd.f32 %v1364, %v1485
        %v1555 = vadd.f32 %v1365, %v1488
        %v1556 = vadd.f32 %v1366, %v1491
        %v1557 = vadd.f32 %v1367, %v1494
        %v1558 = vadd.f32 %v1368, %v1497
        %v1559 = vadd.f32 %v1369, %v1500
        %v1560 = vadd.f32 %v1370, %v1503
        %v1561 = vadd.f32 %v1371, %v1506
        %v1562 = vadd.f32 %v1372, %v1509
        %v1563 = vadd.f32 %v1373, %v1512
        %v1564 = vadd.f32 %v1374, %v1515
        %v1565 = vadd.f32 %v1375, %v1518
        %v1566 = vadd.f32 %v1376, %v1521
        %v1567 = vadd.f32 %v1377, %v1524
        %v1568 = vadd.f32 %v1378, %v1527
        %v1569 = vadd.f32 %v1379, %v1530
        %v1570 = vadd.f32 %v1380, %v1533
        %v1571 = vadd.f32 %v1381, %v1536
        %v1572 = vadd.f32 %v1382, %v1539
        %v1573 = vadd.f32 %v1383, %v1542
        %v1574 = vadd.f32 %v1384, %v1545
        %v1575 = vadd.f32 %v1385, %v1548
        %v1576 = vadd.f32 %v1386, %v1551
        %1577 = vst [vmem:[#allocation2] sm:$0xff] %v1553
        %1578 = vst [vmem:[#allocation2 + $0x8] sm:$0xff] %v1554
        %1579 = vst [vmem:[#allocation2 + $0x10] sm:$0xff] %v1555
        %1580 = vst [vmem:[#allocation2 + $0x18] sm:$0xff] %v1556
        %1581 = vst [vmem:[#allocation2 + $0x20] sm:$0xff] %v1557
        %1582 = vst [vmem:[#allocation2 + $0x28] sm:$0xff] %v1558
        %1583 = vst [vmem:[#allocation2 + $0x30] sm:$0xff] %v1559
        %1584 = vst [vmem:[#allocation2 + $0x38] sm:$0xff] %v1560
        %1585 = vst [vmem:[#allocation2 + $0x40] sm:$0xff] %v1561
        %1586 = vst [vmem:[#allocation2 + $0x48] sm:$0xff] %v1562
        %1587 = vst [vmem:[#allocation2 + $0x50] sm:$0xff] %v1563
        %1588 = vst [vmem:[#allocation2 + $0x58] sm:$0xff] %v1564
        %1589 = vst [vmem:[#allocation2 + $0x60] sm:$0xff] %v1565
        %1590 = vst [vmem:[#allocation2 + $0x68] sm:$0xff] %v1566
        %1591 = vst [vmem:[#allocation2 + $0x70] sm:$0xff] %v1567
        %1592 = vst [vmem:[#allocation2 + $0x78] sm:$0xff] %v1568
        %1593 = vst [vmem:[#allocation2 + $0x80] sm:$0xff] %v1569
        %1594 = vst [vmem:[#allocation2 + $0x88] sm:$0xff] %v1570
        %1595 = vst [vmem:[#allocation2 + $0x90] sm:$0xff] %v1571
        %1596 = vst [vmem:[#allocation2 + $0x98] sm:$0xff] %v1572
        %1597 = vst [vmem:[#allocation2 + $0xa0] sm:$0xff] %v1573
        %1598 = vst [vmem:[#allocation2 + $0xa8] sm:$0xff] %v1574
        %1599 = vst [vmem:[#allocation2 + $0xb0] sm:$0xff] %v1575
        %1600 = vst [vmem:[#allocation2 + $0xb8] sm:$0xff] %v1576
        %v1601 = vrot.slane %v1053, 2
        %v1602 = vrot.slane %v1054, 2
        %v1603 = vrot.slane %v1055, 2
        %v1604 = vrot.slane %v1056, 2
        %v1605 = vrot.slane %v1057, 2
        %v1606 = vrot.slane %v1058, 2
        %v1607 = vrot.slane %v1059, 2
        %v1608 = vrot.slane %v1060, 2
        %v1609 = vrot.slane %v1061, 2
        %v1610 = vrot.slane %v1062, 2
        %v1611 = vrot.slane %v1063, 2
        %v1612 = vrot.slane %v1064, 2
        %v1613 = vrot.slane %v1065, 2
        %v1614 = vrot.slane %v1066, 2
        %v1615 = vrot.slane %v1067, 2
        %v1616 = vrot.slane %v1068, 2
        %v1617 = vrot.slane %v1069, 2
        %v1618 = vrot.slane %v1070, 2
        %v1619 = vrot.slane %v1071, 2
        %v1620 = vrot.slane %v1072, 2
        %v1621 = vrot.slane %v1073, 2
        %v1622 = vrot.slane %v1074, 2
        %v1623 = vrot.slane %v1075, 2
        %v1624 = vrot.slane %v1076, 2
        %v1625 = vsel %vm787, %v1623, %v1624
        %v1626 = vsel %vm787, %v1622, %v1623
        %v1627 = vsel %vm787, %v1621, %v1622
        %v1628 = vsel %vm787, %v1620, %v1621
        %v1629 = vsel %vm787, %v1619, %v1620
        %v1630 = vsel %vm787, %v1618, %v1619
        %v1631 = vsel %vm787, %v1617, %v1618
        %v1632 = vsel %vm787, %v1616, %v1617
        %v1633 = vsel %vm787, %v1615, %v1616
        %v1634 = vsel %vm787, %v1614, %v1615
        %v1635 = vsel %vm787, %v1613, %v1614
        %v1636 = vsel %vm787, %v1612, %v1613
        %v1637 = vsel %vm787, %v1611, %v1612
        %v1638 = vsel %vm787, %v1610, %v1611
        %v1639 = vsel %vm787, %v1609, %v1610
        %v1640 = vsel %vm787, %v1608, %v1609
        %v1641 = vsel %vm787, %v1607, %v1608
        %v1642 = vsel %vm787, %v1606, %v1607
        %v1643 = vsel %vm787, %v1605, %v1606
        %v1644 = vsel %vm787, %v1604, %v1605
        %v1645 = vsel %vm787, %v1603, %v1604
        %v1646 = vsel %vm787, %v1602, %v1603
        %v1647 = vsel %vm787, %v1601, %v1602
        %v1648 = vsel %vm787, %v1624, %v1601
        %v1649 = vld [vmem:[#allocation2] sm:$0xff]
        %v1650 = vld [vmem:[#allocation2 + $0x8] sm:$0xff]
        %v1651 = vld [vmem:[#allocation2 + $0x10] sm:$0xff]
        %v1652 = vld [vmem:[#allocation2 + $0x18] sm:$0xff]
        %v1653 = vld [vmem:[#allocation2 + $0x20] sm:$0xff]
        %v1654 = vld [vmem:[#allocation2 + $0x28] sm:$0xff]
        %v1655 = vld [vmem:[#allocation2 + $0x30] sm:$0xff]
        %v1656 = vld [vmem:[#allocation2 + $0x38] sm:$0xff]
        %v1657 = vld [vmem:[#allocation2 + $0x40] sm:$0xff]
        %v1658 = vld [vmem:[#allocation2 + $0x48] sm:$0xff]
        %v1659 = vld [vmem:[#allocation2 + $0x50] sm:$0xff]
        %v1660 = vld [vmem:[#allocation2 + $0x58] sm:$0xff]
        %v1661 = vld [vmem:[#allocation2 + $0x60] sm:$0xff]
        %v1662 = vld [vmem:[#allocation2 + $0x68] sm:$0xff]
        %v1663 = vld [vmem:[#allocation2 + $0x70] sm:$0xff]
        %v1664 = vld [vmem:[#allocation2 + $0x78] sm:$0xff]
        %v1665 = vld [vmem:[#allocation2 + $0x80] sm:$0xff]
        %v1666 = vld [vmem:[#allocation2 + $0x88] sm:$0xff]
        %v1667 = vld [vmem:[#allocation2 + $0x90] sm:$0xff]
        %v1668 = vld [vmem:[#allocation2 + $0x98] sm:$0xff]
        %v1669 = vld [vmem:[#allocation2 + $0xa0] sm:$0xff]
        %v1670 = vld [vmem:[#allocation2 + $0xa8] sm:$0xff]
        %v1671 = vld [vmem:[#allocation2 + $0xb0] sm:$0xff]
        %v1672 = vld [vmem:[#allocation2 + $0xb8] sm:$0xff]
        %s1673 = scalar_lea.vmem %s1, 20
        %v1674 = vld [vmem:[%s1673] sm:$0xf]
        %v1676 = vsel %vm260, %v1647, 0
        %v1679 = vsel %vm260, %v1646, 0
        %v1682 = vsel %vm260, %v1645, 0
        %v1685 = vsel %vm260, %v1644, 0
        %v1688 = vsel %vm260, %v1643, 0
        %v1691 = vsel %vm260, %v1642, 0
        %v1694 = vsel %vm260, %v1641, 0
        %v1697 = vsel %vm260, %v1640, 0
        %v1700 = vsel %vm260, %v1639, 0
        %v1703 = vsel %vm260, %v1638, 0
        %v1706 = vsel %vm260, %v1637, 0
        %v1709 = vsel %vm260, %v1636, 0
        %v1712 = vsel %vm260, %v1635, 0
        %v1715 = vsel %vm260, %v1634, 0
        %v1718 = vsel %vm260, %v1633, 0
        %v1721 = vsel %vm260, %v1632, 0
        %v1724 = vsel %vm260, %v1631, 0
        %v1727 = vsel %vm260, %v1630, 0
        %v1730 = vsel %vm260, %v1629, 0
        %v1733 = vsel %vm260, %v1628, 0
        %v1736 = vsel %vm260, %v1627, 0
        %v1739 = vsel %vm260, %v1626, 0
        %v1742 = vsel %vm260, %v1625, 0
        %v1745 = vsel %vm260, %v1648, 0
        %v1748 = vsel %vm333, %v1674, 0
        %1750 = vmatpush.msra.mxu0 0.0
        %1751 = vmatpush.msra.mxu0 0.0
        %1752 = vmatpush.msra.mxu0 0.0
        %1753 = vmatpush.msra.mxu0 0.0
        %1754 = vmatpush.msra.mxu0 0.0
        %1755 = vmatpush.msra.mxu0 0.0
        %1756 = vmatpush.msra.mxu0 0.0
        %1757 = vmatpush.msra.mxu0 0.0
        %1758 = vmatpush.msra.mxu0 0.0
        %1759 = vmatpush.msra.mxu0 0.0
        %1760 = vmatpush.msra.mxu0 0.0
        %1761 = vmatpush.msra.mxu0 0.0
        %1762 = vmatpush.msra.mxu0 0.0
        %1763 = vmatpush.msra.mxu0 0.0
        %1764 = vmatpush.msra.mxu0 0.0
        %1765 = vmatpush.msra.mxu0 %v1748
        %1766 = vmatmul.f32.gmra.mxu0 %v1676
        %v1767 = vpop.f32.mrf.mxu0
        %v1768 = vadd.f32 0.0, %v1767
        %1769 = vmatmul.f32.gmra.mxu0 %v1679
        %v1770 = vpop.f32.mrf.mxu0
        %v1771 = vadd.f32 0.0, %v1770
        %1772 = vmatmul.f32.gmra.mxu0 %v1682
        %v1773 = vpop.f32.mrf.mxu0
        %v1774 = vadd.f32 0.0, %v1773
        %1775 = vmatmul.f32.gmra.mxu0 %v1685
        %v1776 = vpop.f32.mrf.mxu0
        %v1777 = vadd.f32 0.0, %v1776
        %1778 = vmatmul.f32.gmra.mxu0 %v1688
        %v1779 = vpop.f32.mrf.mxu0
        %v1780 = vadd.f32 0.0, %v1779
        %1781 = vmatmul.f32.gmra.mxu0 %v1691
        %v1782 = vpop.f32.mrf.mxu0
        %v1783 = vadd.f32 0.0, %v1782
        %1784 = vmatmul.f32.gmra.mxu0 %v1694
        %v1785 = vpop.f32.mrf.mxu0
        %v1786 = vadd.f32 0.0, %v1785
        %1787 = vmatmul.f32.gmra.mxu0 %v1697
        %v1788 = vpop.f32.mrf.mxu0
        %v1789 = vadd.f32 0.0, %v1788
        %1790 = vmatmul.f32.gmra.mxu0 %v1700
        %v1791 = vpop.f32.mrf.mxu0
        %v1792 = vadd.f32 0.0, %v1791
        %1793 = vmatmul.f32.gmra.mxu0 %v1703
        %v1794 = vpop.f32.mrf.mxu0
        %v1795 = vadd.f32 0.0, %v1794
        %1796 = vmatmul.f32.gmra.mxu0 %v1706
        %v1797 = vpop.f32.mrf.mxu0
        %v1798 = vadd.f32 0.0, %v1797
        %1799 = vmatmul.f32.gmra.mxu0 %v1709
        %v1800 = vpop.f32.mrf.mxu0
        %v1801 = vadd.f32 0.0, %v1800
        %1802 = vmatmul.f32.gmra.mxu0 %v1712
        %v1803 = vpop.f32.mrf.mxu0
        %v1804 = vadd.f32 0.0, %v1803
        %1805 = vmatmul.f32.gmra.mxu0 %v1715
        %v1806 = vpop.f32.mrf.mxu0
        %v1807 = vadd.f32 0.0, %v1806
        %1808 = vmatmul.f32.gmra.mxu0 %v1718
        %v1809 = vpop.f32.mrf.mxu0
        %v1810 = vadd.f32 0.0, %v1809
        %1811 = vmatmul.f32.gmra.mxu0 %v1721
        %v1812 = vpop.f32.mrf.mxu0
        %v1813 = vadd.f32 0.0, %v1812
        %1814 = vmatmul.f32.gmra.mxu0 %v1724
        %v1815 = vpop.f32.mrf.mxu0
        %v1816 = vadd.f32 0.0, %v1815
        %1817 = vmatmul.f32.gmra.mxu0 %v1727
        %v1818 = vpop.f32.mrf.mxu0
        %v1819 = vadd.f32 0.0, %v1818
        %1820 = vmatmul.f32.gmra.mxu0 %v1730
        %v1821 = vpop.f32.mrf.mxu0
        %v1822 = vadd.f32 0.0, %v1821
        %1823 = vmatmul.f32.gmra.mxu0 %v1733
        %v1824 = vpop.f32.mrf.mxu0
        %v1825 = vadd.f32 0.0, %v1824
        %1826 = vmatmul.f32.gmra.mxu0 %v1736
        %v1827 = vpop.f32.mrf.mxu0
        %v1828 = vadd.f32 0.0, %v1827
        %1829 = vmatmul.f32.gmra.mxu0 %v1739
        %v1830 = vpop.f32.mrf.mxu0
        %v1831 = vadd.f32 0.0, %v1830
        %1832 = vmatmul.f32.gmra.mxu0 %v1742
        %v1833 = vpop.f32.mrf.mxu0
        %v1834 = vadd.f32 0.0, %v1833
        %1835 = vmatmul.f32.gmra.mxu0 %v1745
        %v1836 = vpop.f32.mrf.mxu0
        %v1837 = vadd.f32 0.0, %v1836
        %1838 = vdwg.mxu0
        %v1839 = vadd.f32 %v1649, %v1768
        %v1840 = vadd.f32 %v1650, %v1771
        %v1841 = vadd.f32 %v1651, %v1774
        %v1842 = vadd.f32 %v1652, %v1777
        %v1843 = vadd.f32 %v1653, %v1780
        %v1844 = vadd.f32 %v1654, %v1783
        %v1845 = vadd.f32 %v1655, %v1786
        %v1846 = vadd.f32 %v1656, %v1789
        %v1847 = vadd.f32 %v1657, %v1792
        %v1848 = vadd.f32 %v1658, %v1795
        %v1849 = vadd.f32 %v1659, %v1798
        %v1850 = vadd.f32 %v1660, %v1801
        %v1851 = vadd.f32 %v1661, %v1804
        %v1852 = vadd.f32 %v1662, %v1807
        %v1853 = vadd.f32 %v1663, %v1810
        %v1854 = vadd.f32 %v1664, %v1813
        %v1855 = vadd.f32 %v1665, %v1816
        %v1856 = vadd.f32 %v1666, %v1819
        %v1857 = vadd.f32 %v1667, %v1822
        %v1858 = vadd.f32 %v1668, %v1825
        %v1859 = vadd.f32 %v1669, %v1828
        %v1860 = vadd.f32 %v1670, %v1831
        %v1861 = vadd.f32 %v1671, %v1834
        %v1862 = vadd.f32 %v1672, %v1837
        %1863 = vst [vmem:[#allocation2] sm:$0xff] %v1839
        %1864 = vst [vmem:[#allocation2 + $0x8] sm:$0xff] %v1840
        %1865 = vst [vmem:[#allocation2 + $0x10] sm:$0xff] %v1841
        %1866 = vst [vmem:[#allocation2 + $0x18] sm:$0xff] %v1842
        %1867 = vst [vmem:[#allocation2 + $0x20] sm:$0xff] %v1843
        %1868 = vst [vmem:[#allocation2 + $0x28] sm:$0xff] %v1844
        %1869 = vst [vmem:[#allocation2 + $0x30] sm:$0xff] %v1845
        %1870 = vst [vmem:[#allocation2 + $0x38] sm:$0xff] %v1846
        %1871 = vst [vmem:[#allocation2 + $0x40] sm:$0xff] %v1847
        %1872 = vst [vmem:[#allocation2 + $0x48] sm:$0xff] %v1848
        %1873 = vst [vmem:[#allocation2 + $0x50] sm:$0xff] %v1849
        %1874 = vst [vmem:[#allocation2 + $0x58] sm:$0xff] %v1850
        %1875 = vst [vmem:[#allocation2 + $0x60] sm:$0xff] %v1851
        %1876 = vst [vmem:[#allocation2 + $0x68] sm:$0xff] %v1852
        %1877 = vst [vmem:[#allocation2 + $0x70] sm:$0xff] %v1853
        %1878 = vst [vmem:[#allocation2 + $0x78] sm:$0xff] %v1854
        %1879 = vst [vmem:[#allocation2 + $0x80] sm:$0xff] %v1855
        %1880 = vst [vmem:[#allocation2 + $0x88] sm:$0xff] %v1856
        %1881 = vst [vmem:[#allocation2 + $0x90] sm:$0xff] %v1857
        %1882 = vst [vmem:[#allocation2 + $0x98] sm:$0xff] %v1858
        %1883 = vst [vmem:[#allocation2 + $0xa0] sm:$0xff] %v1859
        %1884 = vst [vmem:[#allocation2 + $0xa8] sm:$0xff] %v1860
        %1885 = vst [vmem:[#allocation2 + $0xb0] sm:$0xff] %v1861
        %1886 = vst [vmem:[#allocation2 + $0xb8] sm:$0xff] %v1862
        %s1887 = sadd.s32 %s184, 2
        %s1888 = smul.u32 %s1887, 24
        %s1889 = scalar_lea.vmem %s182, %s1888
        %v1890 = vld [vmem:[%s1889] sm:$0xff]
        %v1891 = vld [vmem:[%s1889 + $0x8] sm:$0xff]
        %v1892 = vld [vmem:[%s1889 + $0x10] sm:$0xff]
        %v1893 = vld [vmem:[%s1889 + $0x18] sm:$0xff]
        %v1894 = vld [vmem:[%s1889 + $0x20] sm:$0xff]
        %v1895 = vld [vmem:[%s1889 + $0x28] sm:$0xff]
        %v1896 = vld [vmem:[%s1889 + $0x30] sm:$0xff]
        %v1897 = vld [vmem:[%s1889 + $0x38] sm:$0xff]
        %v1898 = vld [vmem:[%s1889 + $0x40] sm:$0xff]
        %v1899 = vld [vmem:[%s1889 + $0x48] sm:$0xff]
        %v1900 = vld [vmem:[%s1889 + $0x50] sm:$0xff]
        %v1901 = vld [vmem:[%s1889 + $0x58] sm:$0xff]
        %v1902 = vld [vmem:[%s1889 + $0x60] sm:$0xff]
        %v1903 = vld [vmem:[%s1889 + $0x68] sm:$0xff]
        %v1904 = vld [vmem:[%s1889 + $0x70] sm:$0xff]
        %v1905 = vld [vmem:[%s1889 + $0x78] sm:$0xff]
        %v1906 = vld [vmem:[%s1889 + $0x80] sm:$0xff]
        %v1907 = vld [vmem:[%s1889 + $0x88] sm:$0xff]
        %v1908 = vld [vmem:[%s1889 + $0x90] sm:$0xff]
        %v1909 = vld [vmem:[%s1889 + $0x98] sm:$0xff]
        %v1910 = vld [vmem:[%s1889 + $0xa0] sm:$0xff]
        %v1911 = vld [vmem:[%s1889 + $0xa8] sm:$0xff]
        %v1912 = vld [vmem:[%s1889 + $0xb0] sm:$0xff]
        %v1913 = vld [vmem:[%s1889 + $0xb8] sm:$0xff]
        %v1914 = vld [vmem:[#allocation2] sm:$0xff]
        %v1915 = vld [vmem:[#allocation2 + $0x8] sm:$0xff]
        %v1916 = vld [vmem:[#allocation2 + $0x10] sm:$0xff]
        %v1917 = vld [vmem:[#allocation2 + $0x18] sm:$0xff]
        %v1918 = vld [vmem:[#allocation2 + $0x20] sm:$0xff]
        %v1919 = vld [vmem:[#allocation2 + $0x28] sm:$0xff]
        %v1920 = vld [vmem:[#allocation2 + $0x30] sm:$0xff]
        %v1921 = vld [vmem:[#allocation2 + $0x38] sm:$0xff]
        %v1922 = vld [vmem:[#allocation2 + $0x40] sm:$0xff]
        %v1923 = vld [vmem:[#allocation2 + $0x48] sm:$0xff]
        %v1924 = vld [vmem:[#allocation2 + $0x50] sm:$0xff]
        %v1925 = vld [vmem:[#allocation2 + $0x58] sm:$0xff]
        %v1926 = vld [vmem:[#allocation2 + $0x60] sm:$0xff]
        %v1927 = vld [vmem:[#allocation2 + $0x68] sm:$0xff]
        %v1928 = vld [vmem:[#allocation2 + $0x70] sm:$0xff]
        %v1929 = vld [vmem:[#allocation2 + $0x78] sm:$0xff]
        %v1930 = vld [vmem:[#allocation2 + $0x80] sm:$0xff]
        %v1931 = vld [vmem:[#allocation2 + $0x88] sm:$0xff]
        %v1932 = vld [vmem:[#allocation2 + $0x90] sm:$0xff]
        %v1933 = vld [vmem:[#allocation2 + $0x98] sm:$0xff]
        %v1934 = vld [vmem:[#allocation2 + $0xa0] sm:$0xff]
        %v1935 = vld [vmem:[#allocation2 + $0xa8] sm:$0xff]
        %v1936 = vld [vmem:[#allocation2 + $0xb0] sm:$0xff]
        %v1937 = vld [vmem:[#allocation2 + $0xb8] sm:$0xff]
        %s1938 = scalar_lea.vmem %s1, 24
        %v1939 = vld [vmem:[%s1938] sm:$0xf]
        %v1941 = vsel %vm260, %v1890, 0
        %v1944 = vsel %vm260, %v1891, 0
        %v1947 = vsel %vm260, %v1892, 0
        %v1950 = vsel %vm260, %v1893, 0
        %v1953 = vsel %vm260, %v1894, 0
        %v1956 = vsel %vm260, %v1895, 0
        %v1959 = vsel %vm260, %v1896, 0
        %v1962 = vsel %vm260, %v1897, 0
        %v1965 = vsel %vm260, %v1898, 0
        %v1968 = vsel %vm260, %v1899, 0
        %v1971 = vsel %vm260, %v1900, 0
        %v1974 = vsel %vm260, %v1901, 0
        %v1977 = vsel %vm260, %v1902, 0
        %v1980 = vsel %vm260, %v1903, 0
        %v1983 = vsel %vm260, %v1904, 0
        %v1986 = vsel %vm260, %v1905, 0
        %v1989 = vsel %vm260, %v1906, 0
        %v1992 = vsel %vm260, %v1907, 0
        %v1995 = vsel %vm260, %v1908, 0
        %v1998 = vsel %vm260, %v1909, 0
        %v2001 = vsel %vm260, %v1910, 0
        %v2004 = vsel %vm260, %v1911, 0
        %v2007 = vsel %vm260, %v1912, 0
        %v2010 = vsel %vm260, %v1913, 0
        %v2013 = vsel %vm333, %v1939, 0
        %2015 = vmatpush.msra.mxu0 0.0
        %2016 = vmatpush.msra.mxu0 0.0
        %2017 = vmatpush.msra.mxu0 0.0
        %2018 = vmatpush.msra.mxu0 0.0
        %2019 = vmatpush.msra.mxu0 0.0
        %2020 = vmatpush.msra.mxu0 0.0
        %2021 = vmatpush.msra.mxu0 0.0
        %2022 = vmatpush.msra.mxu0 0.0
        %2023 = vmatpush.msra.mxu0 0.0
        %2024 = vmatpush.msra.mxu0 0.0
        %2025 = vmatpush.msra.mxu0 0.0
        %2026 = vmatpush.msra.mxu0 0.0
        %2027 = vmatpush.msra.mxu0 0.0
        %2028 = vmatpush.msra.mxu0 0.0
        %2029 = vmatpush.msra.mxu0 0.0
        %2030 = vmatpush.msra.mxu0 %v2013
        %2031 = vmatmul.f32.gmra.mxu0 %v1941
        %v2032 = vpop.f32.mrf.mxu0
        %v2033 = vadd.f32 0.0, %v2032
        %2034 = vmatmul.f32.gmra.mxu0 %v1944
        %v2035 = vpop.f32.mrf.mxu0
        %v2036 = vadd.f32 0.0, %v2035
        %2037 = vmatmul.f32.gmra.mxu0 %v1947
        %v2038 = vpop.f32.mrf.mxu0
        %v2039 = vadd.f32 0.0, %v2038
        %2040 = vmatmul.f32.gmra.mxu0 %v1950
        %v2041 = vpop.f32.mrf.mxu0
        %v2042 = vadd.f32 0.0, %v2041
        %2043 = vmatmul.f32.gmra.mxu0 %v1953
        %v2044 = vpop.f32.mrf.mxu0
        %v2045 = vadd.f32 0.0, %v2044
        %2046 = vmatmul.f32.gmra.mxu0 %v1956
        %v2047 = vpop.f32.mrf.mxu0
        %v2048 = vadd.f32 0.0, %v2047
        %2049 = vmatmul.f32.gmra.mxu0 %v1959
        %v2050 = vpop.f32.mrf.mxu0
        %v2051 = vadd.f32 0.0, %v2050
        %2052 = vmatmul.f32.gmra.mxu0 %v1962
        %v2053 = vpop.f32.mrf.mxu0
        %v2054 = vadd.f32 0.0, %v2053
        %2055 = vmatmul.f32.gmra.mxu0 %v1965
        %v2056 = vpop.f32.mrf.mxu0
        %v2057 = vadd.f32 0.0, %v2056
        %2058 = vmatmul.f32.gmra.mxu0 %v1968
        %v2059 = vpop.f32.mrf.mxu0
        %v2060 = vadd.f32 0.0, %v2059
        %2061 = vmatmul.f32.gmra.mxu0 %v1971
        %v2062 = vpop.f32.mrf.mxu0
        %v2063 = vadd.f32 0.0, %v2062
        %2064 = vmatmul.f32.gmra.mxu0 %v1974
        %v2065 = vpop.f32.mrf.mxu0
        %v2066 = vadd.f32 0.0, %v2065
        %2067 = vmatmul.f32.gmra.mxu0 %v1977
        %v2068 = vpop.f32.mrf.mxu0
        %v2069 = vadd.f32 0.0, %v2068
        %2070 = vmatmul.f32.gmra.mxu0 %v1980
        %v2071 = vpop.f32.mrf.mxu0
        %v2072 = vadd.f32 0.0, %v2071
        %2073 = vmatmul.f32.gmra.mxu0 %v1983
        %v2074 = vpop.f32.mrf.mxu0
        %v2075 = vadd.f32 0.0, %v2074
        %2076 = vmatmul.f32.gmra.mxu0 %v1986
        %v2077 = vpop.f32.mrf.mxu0
        %v2078 = vadd.f32 0.0, %v2077
        %2079 = vmatmul.f32.gmra.mxu0 %v1989
        %v2080 = vpop.f32.mrf.mxu0
        %v2081 = vadd.f32 0.0, %v2080
        %2082 = vmatmul.f32.gmra.mxu0 %v1992
        %v2083 = vpop.f32.mrf.mxu0
        %v2084 = vadd.f32 0.0, %v2083
        %2085 = vmatmul.f32.gmra.mxu0 %v1995
        %v2086 = vpop.f32.mrf.mxu0
        %v2087 = vadd.f32 0.0, %v2086
        %2088 = vmatmul.f32.gmra.mxu0 %v1998
        %v2089 = vpop.f32.mrf.mxu0
        %v2090 = vadd.f32 0.0, %v2089
        %2091 = vmatmul.f32.gmra.mxu0 %v2001
        %v2092 = vpop.f32.mrf.mxu0
        %v2093 = vadd.f32 0.0, %v2092
        %2094 = vmatmul.f32.gmra.mxu0 %v2004
        %v2095 = vpop.f32.mrf.mxu0
        %v2096 = vadd.f32 0.0, %v2095
        %2097 = vmatmul.f32.gmra.mxu0 %v2007
        %v2098 = vpop.f32.mrf.mxu0
        %v2099 = vadd.f32 0.0, %v2098
        %2100 = vmatmul.f32.gmra.mxu0 %v2010
        %v2101 = vpop.f32.mrf.mxu0
        %v2102 = vadd.f32 0.0, %v2101
        %2103 = vdwg.mxu0
        %v2104 = vadd.f32 %v1914, %v2033
        %v2105 = vadd.f32 %v1915, %v2036
        %v2106 = vadd.f32 %v1916, %v2039
        %v2107 = vadd.f32 %v1917, %v2042
        %v2108 = vadd.f32 %v1918, %v2045
        %v2109 = vadd.f32 %v1919, %v2048
        %v2110 = vadd.f32 %v1920, %v2051
        %v2111 = vadd.f32 %v1921, %v2054
        %v2112 = vadd.f32 %v1922, %v2057
        %v2113 = vadd.f32 %v1923, %v2060
        %v2114 = vadd.f32 %v1924, %v2063
        %v2115 = vadd.f32 %v1925, %v2066
        %v2116 = vadd.f32 %v1926, %v2069
        %v2117 = vadd.f32 %v1927, %v2072
        %v2118 = vadd.f32 %v1928, %v2075
        %v2119 = vadd.f32 %v1929, %v2078
        %v2120 = vadd.f32 %v1930, %v2081
        %v2121 = vadd.f32 %v1931, %v2084
        %v2122 = vadd.f32 %v1932, %v2087
        %v2123 = vadd.f32 %v1933, %v2090
        %v2124 = vadd.f32 %v1934, %v2093
        %v2125 = vadd.f32 %v1935, %v2096
        %v2126 = vadd.f32 %v1936, %v2099
        %v2127 = vadd.f32 %v1937, %v2102
        %2128 = vst [vmem:[#allocation2] sm:$0xff] %v2104
        %2129 = vst [vmem:[#allocation2 + $0x8] sm:$0xff] %v2105
        %2130 = vst [vmem:[#allocation2 + $0x10] sm:$0xff] %v2106
        %2131 = vst [vmem:[#allocation2 + $0x18] sm:$0xff] %v2107
        %2132 = vst [vmem:[#allocation2 + $0x20] sm:$0xff] %v2108
        %2133 = vst [vmem:[#allocation2 + $0x28] sm:$0xff] %v2109
        %2134 = vst [vmem:[#allocation2 + $0x30] sm:$0xff] %v2110
        %2135 = vst [vmem:[#allocation2 + $0x38] sm:$0xff] %v2111
        %2136 = vst [vmem:[#allocation2 + $0x40] sm:$0xff] %v2112
        %2137 = vst [vmem:[#allocation2 + $0x48] sm:$0xff] %v2113
        %2138 = vst [vmem:[#allocation2 + $0x50] sm:$0xff] %v2114
        %2139 = vst [vmem:[#allocation2 + $0x58] sm:$0xff] %v2115
        %2140 = vst [vmem:[#allocation2 + $0x60] sm:$0xff] %v2116
        %2141 = vst [vmem:[#allocation2 + $0x68] sm:$0xff] %v2117
        %2142 = vst [vmem:[#allocation2 + $0x70] sm:$0xff] %v2118
        %2143 = vst [vmem:[#allocation2 + $0x78] sm:$0xff] %v2119
        %2144 = vst [vmem:[#allocation2 + $0x80] sm:$0xff] %v2120
        %2145 = vst [vmem:[#allocation2 + $0x88] sm:$0xff] %v2121
        %2146 = vst [vmem:[#allocation2 + $0x90] sm:$0xff] %v2122
        %2147 = vst [vmem:[#allocation2 + $0x98] sm:$0xff] %v2123
        %2148 = vst [vmem:[#allocation2 + $0xa0] sm:$0xff] %v2124
        %2149 = vst [vmem:[#allocation2 + $0xa8] sm:$0xff] %v2125
        %2150 = vst [vmem:[#allocation2 + $0xb0] sm:$0xff] %v2126
        %2151 = vst [vmem:[#allocation2 + $0xb8] sm:$0xff] %v2127
        %v2152 = vrot.slane %v1890, 1
        %v2153 = vrot.slane %v1891, 1
        %v2154 = vrot.slane %v1892, 1
        %v2155 = vrot.slane %v1893, 1
        %v2156 = vrot.slane %v1894, 1
        %v2157 = vrot.slane %v1895, 1
        %v2158 = vrot.slane %v1896, 1
        %v2159 = vrot.slane %v1897, 1
        %v2160 = vrot.slane %v1898, 1
        %v2161 = vrot.slane %v1899, 1
        %v2162 = vrot.slane %v1900, 1
        %v2163 = vrot.slane %v1901, 1
        %v2164 = vrot.slane %v1902, 1
        %v2165 = vrot.slane %v1903, 1
        %v2166 = vrot.slane %v1904, 1
        %v2167 = vrot.slane %v1905, 1
        %v2168 = vrot.slane %v1906, 1
        %v2169 = vrot.slane %v1907, 1
        %v2170 = vrot.slane %v1908, 1
        %v2171 = vrot.slane %v1909, 1
        %v2172 = vrot.slane %v1910, 1
        %v2173 = vrot.slane %v1911, 1
        %v2174 = vrot.slane %v1912, 1
        %v2175 = vrot.slane %v1913, 1
        %v2176 = vsel %vm500, %v2174, %v2175
        %v2177 = vsel %vm500, %v2173, %v2174
        %v2178 = vsel %vm500, %v2172, %v2173
        %v2179 = vsel %vm500, %v2171, %v2172
        %v2180 = vsel %vm500, %v2170, %v2171
        %v2181 = vsel %vm500, %v2169, %v2170
        %v2182 = vsel %vm500, %v2168, %v2169
        %v2183 = vsel %vm500, %v2167, %v2168
        %v2184 = vsel %vm500, %v2166, %v2167
        %v2185 = vsel %vm500, %v2165, %v2166
        %v2186 = vsel %vm500, %v2164, %v2165
        %v2187 = vsel %vm500, %v2163, %v2164
        %v2188 = vsel %vm500, %v2162, %v2163
        %v2189 = vsel %vm500, %v2161, %v2162
        %v2190 = vsel %vm500, %v2160, %v2161
        %v2191 = vsel %vm500, %v2159, %v2160
        %v2192 = vsel %vm500, %v2158, %v2159
        %v2193 = vsel %vm500, %v2157, %v2158
        %v2194 = vsel %vm500, %v2156, %v2157
        %v2195 = vsel %vm500, %v2155, %v2156
        %v2196 = vsel %vm500, %v2154, %v2155
        %v2197 = vsel %vm500, %v2153, %v2154
        %v2198 = vsel %vm500, %v2152, %v2153
        %v2199 = vsel %vm500, %v2175, %v2152
        %v2200 = vld [vmem:[#allocation2] sm:$0xff]
        %v2201 = vld [vmem:[#allocation2 + $0x8] sm:$0xff]
        %v2202 = vld [vmem:[#allocation2 + $0x10] sm:$0xff]
        %v2203 = vld [vmem:[#allocation2 + $0x18] sm:$0xff]
        %v2204 = vld [vmem:[#allocation2 + $0x20] sm:$0xff]
        %v2205 = vld [vmem:[#allocation2 + $0x28] sm:$0xff]
        %v2206 = vld [vmem:[#allocation2 + $0x30] sm:$0xff]
        %v2207 = vld [vmem:[#allocation2 + $0x38] sm:$0xff]
        %v2208 = vld [vmem:[#allocation2 + $0x40] sm:$0xff]
        %v2209 = vld [vmem:[#allocation2 + $0x48] sm:$0xff]
        %v2210 = vld [vmem:[#allocation2 + $0x50] sm:$0xff]
        %v2211 = vld [vmem:[#allocation2 + $0x58] sm:$0xff]
        %v2212 = vld [vmem:[#allocation2 + $0x60] sm:$0xff]
        %v2213 = vld [vmem:[#allocation2 + $0x68] sm:$0xff]
        %v2214 = vld [vmem:[#allocation2 + $0x70] sm:$0xff]
        %v2215 = vld [vmem:[#allocation2 + $0x78] sm:$0xff]
        %v2216 = vld [vmem:[#allocation2 + $0x80] sm:$0xff]
        %v2217 = vld [vmem:[#allocation2 + $0x88] sm:$0xff]
        %v2218 = vld [vmem:[#allocation2 + $0x90] sm:$0xff]
        %v2219 = vld [vmem:[#allocation2 + $0x98] sm:$0xff]
        %v2220 = vld [vmem:[#allocation2 + $0xa0] sm:$0xff]
        %v2221 = vld [vmem:[#allocation2 + $0xa8] sm:$0xff]
        %v2222 = vld [vmem:[#allocation2 + $0xb0] sm:$0xff]
        %v2223 = vld [vmem:[#allocation2 + $0xb8] sm:$0xff]
        %s2224 = scalar_lea.vmem %s1, 28
        %v2225 = vld [vmem:[%s2224] sm:$0xf]
        %v2227 = vsel %vm260, %v2198, 0
        %v2230 = vsel %vm260, %v2197, 0
        %v2233 = vsel %vm260, %v2196, 0
        %v2236 = vsel %vm260, %v2195, 0
        %v2239 = vsel %vm260, %v2194, 0
        %v2242 = vsel %vm260, %v2193, 0
        %v2245 = vsel %vm260, %v2192, 0
        %v2248 = vsel %vm260, %v2191, 0
        %v2251 = vsel %vm260, %v2190, 0
        %v2254 = vsel %vm260, %v2189, 0
        %v2257 = vsel %vm260, %v2188, 0
        %v2260 = vsel %vm260, %v2187, 0
        %v2263 = vsel %vm260, %v2186, 0
        %v2266 = vsel %vm260, %v2185, 0
        %v2269 = vsel %vm260, %v2184, 0
        %v2272 = vsel %vm260, %v2183, 0
        %v2275 = vsel %vm260, %v2182, 0
        %v2278 = vsel %vm260, %v2181, 0
        %v2281 = vsel %vm260, %v2180, 0
        %v2284 = vsel %vm260, %v2179, 0
        %v2287 = vsel %vm260, %v2178, 0
        %v2290 = vsel %vm260, %v2177, 0
        %v2293 = vsel %vm260, %v2176, 0
        %v2296 = vsel %vm260, %v2199, 0
        %v2299 = vsel %vm333, %v2225, 0
        %2301 = vmatpush.msra.mxu0 0.0
        %2302 = vmatpush.msra.mxu0 0.0
        %2303 = vmatpush.msra.mxu0 0.0
        %2304 = vmatpush.msra.mxu0 0.0
        %2305 = vmatpush.msra.mxu0 0.0
        %2306 = vmatpush.msra.mxu0 0.0
        %2307 = vmatpush.msra.mxu0 0.0
        %2308 = vmatpush.msra.mxu0 0.0
        %2309 = vmatpush.msra.mxu0 0.0
        %2310 = vmatpush.msra.mxu0 0.0
        %2311 = vmatpush.msra.mxu0 0.0
        %2312 = vmatpush.msra.mxu0 0.0
        %2313 = vmatpush.msra.mxu0 0.0
        %2314 = vmatpush.msra.mxu0 0.0
        %2315 = vmatpush.msra.mxu0 0.0
        %2316 = vmatpush.msra.mxu0 %v2299
        %2317 = vmatmul.f32.gmra.mxu0 %v2227
        %v2318 = vpop.f32.mrf.mxu0
        %v2319 = vadd.f32 0.0, %v2318
        %2320 = vmatmul.f32.gmra.mxu0 %v2230
        %v2321 = vpop.f32.mrf.mxu0
        %v2322 = vadd.f32 0.0, %v2321
        %2323 = vmatmul.f32.gmra.mxu0 %v2233
        %v2324 = vpop.f32.mrf.mxu0
        %v2325 = vadd.f32 0.0, %v2324
        %2326 = vmatmul.f32.gmra.mxu0 %v2236
        %v2327 = vpop.f32.mrf.mxu0
        %v2328 = vadd.f32 0.0, %v2327
        %2329 = vmatmul.f32.gmra.mxu0 %v2239
        %v2330 = vpop.f32.mrf.mxu0
        %v2331 = vadd.f32 0.0, %v2330
        %2332 = vmatmul.f32.gmra.mxu0 %v2242
        %v2333 = vpop.f32.mrf.mxu0
        %v2334 = vadd.f32 0.0, %v2333
        %2335 = vmatmul.f32.gmra.mxu0 %v2245
        %v2336 = vpop.f32.mrf.mxu0
        %v2337 = vadd.f32 0.0, %v2336
        %2338 = vmatmul.f32.gmra.mxu0 %v2248
        %v2339 = vpop.f32.mrf.mxu0
        %v2340 = vadd.f32 0.0, %v2339
        %2341 = vmatmul.f32.gmra.mxu0 %v2251
        %v2342 = vpop.f32.mrf.mxu0
        %v2343 = vadd.f32 0.0, %v2342
        %2344 = vmatmul.f32.gmra.mxu0 %v2254
        %v2345 = vpop.f32.mrf.mxu0
        %v2346 = vadd.f32 0.0, %v2345
        %2347 = vmatmul.f32.gmra.mxu0 %v2257
        %v2348 = vpop.f32.mrf.mxu0
        %v2349 = vadd.f32 0.0, %v2348
        %2350 = vmatmul.f32.gmra.mxu0 %v2260
        %v2351 = vpop.f32.mrf.mxu0
        %v2352 = vadd.f32 0.0, %v2351
        %2353 = vmatmul.f32.gmra.mxu0 %v2263
        %v2354 = vpop.f32.mrf.mxu0
        %v2355 = vadd.f32 0.0, %v2354
        %2356 = vmatmul.f32.gmra.mxu0 %v2266
        %v2357 = vpop.f32.mrf.mxu0
        %v2358 = vadd.f32 0.0, %v2357
        %2359 = vmatmul.f32.gmra.mxu0 %v2269
        %v2360 = vpop.f32.mrf.mxu0
        %v2361 = vadd.f32 0.0, %v2360
        %2362 = vmatmul.f32.gmra.mxu0 %v2272
        %v2363 = vpop.f32.mrf.mxu0
        %v2364 = vadd.f32 0.0, %v2363
        %2365 = vmatmul.f32.gmra.mxu0 %v2275
        %v2366 = vpop.f32.mrf.mxu0
        %v2367 = vadd.f32 0.0, %v2366
        %2368 = vmatmul.f32.gmra.mxu0 %v2278
        %v2369 = vpop.f32.mrf.mxu0
        %v2370 = vadd.f32 0.0, %v2369
        %2371 = vmatmul.f32.gmra.mxu0 %v2281
        %v2372 = vpop.f32.mrf.mxu0
        %v2373 = vadd.f32 0.0, %v2372
        %2374 = vmatmul.f32.gmra.mxu0 %v2284
        %v2375 = vpop.f32.mrf.mxu0
        %v2376 = vadd.f32 0.0, %v2375
        %2377 = vmatmul.f32.gmra.mxu0 %v2287
        %v2378 = vpop.f32.mrf.mxu0
        %v2379 = vadd.f32 0.0, %v2378
        %2380 = vmatmul.f32.gmra.mxu0 %v2290
        %v2381 = vpop.f32.mrf.mxu0
        %v2382 = vadd.f32 0.0, %v2381
        %2383 = vmatmul.f32.gmra.mxu0 %v2293
        %v2384 = vpop.f32.mrf.mxu0
        %v2385 = vadd.f32 0.0, %v2384
        %2386 = vmatmul.f32.gmra.mxu0 %v2296
        %v2387 = vpop.f32.mrf.mxu0
        %v2388 = vadd.f32 0.0, %v2387
        %2389 = vdwg.mxu0
        %v2390 = vadd.f32 %v2200, %v2319
        %v2391 = vadd.f32 %v2201, %v2322
        %v2392 = vadd.f32 %v2202, %v2325
        %v2393 = vadd.f32 %v2203, %v2328
        %v2394 = vadd.f32 %v2204, %v2331
        %v2395 = vadd.f32 %v2205, %v2334
        %v2396 = vadd.f32 %v2206, %v2337
        %v2397 = vadd.f32 %v2207, %v2340
        %v2398 = vadd.f32 %v2208, %v2343
        %v2399 = vadd.f32 %v2209, %v2346
        %v2400 = vadd.f32 %v2210, %v2349
        %v2401 = vadd.f32 %v2211, %v2352
        %v2402 = vadd.f32 %v2212, %v2355
        %v2403 = vadd.f32 %v2213, %v2358
        %v2404 = vadd.f32 %v2214, %v2361
        %v2405 = vadd.f32 %v2215, %v2364
        %v2406 = vadd.f32 %v2216, %v2367
        %v2407 = vadd.f32 %v2217, %v2370
        %v2408 = vadd.f32 %v2218, %v2373
        %v2409 = vadd.f32 %v2219, %v2376
        %v2410 = vadd.f32 %v2220, %v2379
        %v2411 = vadd.f32 %v2221, %v2382
        %v2412 = vadd.f32 %v2222, %v2385
        %v2413 = vadd.f32 %v2223, %v2388
        %2414 = vst [vmem:[#allocation2] sm:$0xff] %v2390
        %2415 = vst [vmem:[#allocation2 + $0x8] sm:$0xff] %v2391
        %2416 = vst [vmem:[#allocation2 + $0x10] sm:$0xff] %v2392
        %2417 = vst [vmem:[#allocation2 + $0x18] sm:$0xff] %v2393
        %2418 = vst [vmem:[#allocation2 + $0x20] sm:$0xff] %v2394
        %2419 = vst [vmem:[#allocation2 + $0x28] sm:$0xff] %v2395
        %2420 = vst [vmem:[#allocation2 + $0x30] sm:$0xff] %v2396
        %2421 = vst [vmem:[#allocation2 + $0x38] sm:$0xff] %v2397
        %2422 = vst [vmem:[#allocation2 + $0x40] sm:$0xff] %v2398
        %2423 = vst [vmem:[#allocation2 + $0x48] sm:$0xff] %v2399
        %2424 = vst [vmem:[#allocation2 + $0x50] sm:$0xff] %v2400
        %2425 = vst [vmem:[#allocation2 + $0x58] sm:$0xff] %v2401
        %2426 = vst [vmem:[#allocation2 + $0x60] sm:$0xff] %v2402
        %2427 = vst [vmem:[#allocation2 + $0x68] sm:$0xff] %v2403
        %2428 = vst [vmem:[#allocation2 + $0x70] sm:$0xff] %v2404
        %2429 = vst [vmem:[#allocation2 + $0x78] sm:$0xff] %v2405
        %2430 = vst [vmem:[#allocation2 + $0x80] sm:$0xff] %v2406
        %2431 = vst [vmem:[#allocation2 + $0x88] sm:$0xff] %v2407
        %2432 = vst [vmem:[#allocation2 + $0x90] sm:$0xff] %v2408
        %2433 = vst [vmem:[#allocation2 + $0x98] sm:$0xff] %v2409
        %2434 = vst [vmem:[#allocation2 + $0xa0] sm:$0xff] %v2410
        %2435 = vst [vmem:[#allocation2 + $0xa8] sm:$0xff] %v2411
        %2436 = vst [vmem:[#allocation2 + $0xb0] sm:$0xff] %v2412
        %2437 = vst [vmem:[#allocation2 + $0xb8] sm:$0xff] %v2413
        %v2438 = vrot.slane %v1890, 2
        %v2439 = vrot.slane %v1891, 2
        %v2440 = vrot.slane %v1892, 2
        %v2441 = vrot.slane %v1893, 2
        %v2442 = vrot.slane %v1894, 2
        %v2443 = vrot.slane %v1895, 2
        %v2444 = vrot.slane %v1896, 2
        %v2445 = vrot.slane %v1897, 2
        %v2446 = vrot.slane %v1898, 2
        %v2447 = vrot.slane %v1899, 2
        %v2448 = vrot.slane %v1900, 2
        %v2449 = vrot.slane %v1901, 2
        %v2450 = vrot.slane %v1902, 2
        %v2451 = vrot.slane %v1903, 2
        %v2452 = vrot.slane %v1904, 2
        %v2453 = vrot.slane %v1905, 2
        %v2454 = vrot.slane %v1906, 2
        %v2455 = vrot.slane %v1907, 2
        %v2456 = vrot.slane %v1908, 2
        %v2457 = vrot.slane %v1909, 2
        %v2458 = vrot.slane %v1910, 2
        %v2459 = vrot.slane %v1911, 2
        %v2460 = vrot.slane %v1912, 2
        %v2461 = vrot.slane %v1913, 2
        %v2462 = vsel %vm787, %v2460, %v2461
        %v2463 = vsel %vm787, %v2459, %v2460
        %v2464 = vsel %vm787, %v2458, %v2459
        %v2465 = vsel %vm787, %v2457, %v2458
        %v2466 = vsel %vm787, %v2456, %v2457
        %v2467 = vsel %vm787, %v2455, %v2456
        %v2468 = vsel %vm787, %v2454, %v2455
        %v2469 = vsel %vm787, %v2453, %v2454
        %v2470 = vsel %vm787, %v2452, %v2453
        %v2471 = vsel %vm787, %v2451, %v2452
        %v2472 = vsel %vm787, %v2450, %v2451
        %v2473 = vsel %vm787, %v2449, %v2450
        %v2474 = vsel %vm787, %v2448, %v2449
        %v2475 = vsel %vm787, %v2447, %v2448
        %v2476 = vsel %vm787, %v2446, %v2447
        %v2477 = vsel %vm787, %v2445, %v2446
        %v2478 = vsel %vm787, %v2444, %v2445
        %v2479 = vsel %vm787, %v2443, %v2444
        %v2480 = vsel %vm787, %v2442, %v2443
        %v2481 = vsel %vm787, %v2441, %v2442
        %v2482 = vsel %vm787, %v2440, %v2441
        %v2483 = vsel %vm787, %v2439, %v2440
        %v2484 = vsel %vm787, %v2438, %v2439
        %v2485 = vsel %vm787, %v2461, %v2438
        %v2486 = vld [vmem:[#allocation2] sm:$0xff]
        %v2487 = vld [vmem:[#allocation2 + $0x8] sm:$0xff]
        %v2488 = vld [vmem:[#allocation2 + $0x10] sm:$0xff]
        %v2489 = vld [vmem:[#allocation2 + $0x18] sm:$0xff]
        %v2490 = vld [vmem:[#allocation2 + $0x20] sm:$0xff]
        %v2491 = vld [vmem:[#allocation2 + $0x28] sm:$0xff]
        %v2492 = vld [vmem:[#allocation2 + $0x30] sm:$0xff]
        %v2493 = vld [vmem:[#allocation2 + $0x38] sm:$0xff]
        %v2494 = vld [vmem:[#allocation2 + $0x40] sm:$0xff]
        %v2495 = vld [vmem:[#allocation2 + $0x48] sm:$0xff]
        %v2496 = vld [vmem:[#allocation2 + $0x50] sm:$0xff]
        %v2497 = vld [vmem:[#allocation2 + $0x58] sm:$0xff]
        %v2498 = vld [vmem:[#allocation2 + $0x60] sm:$0xff]
        %v2499 = vld [vmem:[#allocation2 + $0x68] sm:$0xff]
        %v2500 = vld [vmem:[#allocation2 + $0x70] sm:$0xff]
        %v2501 = vld [vmem:[#allocation2 + $0x78] sm:$0xff]
        %v2502 = vld [vmem:[#allocation2 + $0x80] sm:$0xff]
        %v2503 = vld [vmem:[#allocation2 + $0x88] sm:$0xff]
        %v2504 = vld [vmem:[#allocation2 + $0x90] sm:$0xff]
        %v2505 = vld [vmem:[#allocation2 + $0x98] sm:$0xff]
        %v2506 = vld [vmem:[#allocation2 + $0xa0] sm:$0xff]
        %v2507 = vld [vmem:[#allocation2 + $0xa8] sm:$0xff]
        %v2508 = vld [vmem:[#allocation2 + $0xb0] sm:$0xff]
        %v2509 = vld [vmem:[#allocation2 + $0xb8] sm:$0xff]
        %s2510 = scalar_lea.vmem %s1, 32
        %v2511 = vld [vmem:[%s2510] sm:$0xf]
        %v2513 = vsel %vm260, %v2484, 0
        %v2516 = vsel %vm260, %v2483, 0
        %v2519 = vsel %vm260, %v2482, 0
        %v2522 = vsel %vm260, %v2481, 0
        %v2525 = vsel %vm260, %v2480, 0
        %v2528 = vsel %vm260, %v2479, 0
        %v2531 = vsel %vm260, %v2478, 0
        %v2534 = vsel %vm260, %v2477, 0
        %v2537 = vsel %vm260, %v2476, 0
        %v2540 = vsel %vm260, %v2475, 0
        %v2543 = vsel %vm260, %v2474, 0
        %v2546 = vsel %vm260, %v2473, 0
        %v2549 = vsel %vm260, %v2472, 0
        %v2552 = vsel %vm260, %v2471, 0
        %v2555 = vsel %vm260, %v2470, 0
        %v2558 = vsel %vm260, %v2469, 0
        %v2561 = vsel %vm260, %v2468, 0
        %v2564 = vsel %vm260, %v2467, 0
        %v2567 = vsel %vm260, %v2466, 0
        %v2570 = vsel %vm260, %v2465, 0
        %v2573 = vsel %vm260, %v2464, 0
        %v2576 = vsel %vm260, %v2463, 0
        %v2579 = vsel %vm260, %v2462, 0
        %v2582 = vsel %vm260, %v2485, 0
        %v2585 = vsel %vm333, %v2511, 0
        %2587 = vmatpush.msra.mxu0 0.0
        %2588 = vmatpush.msra.mxu0 0.0
        %2589 = vmatpush.msra.mxu0 0.0
        %2590 = vmatpush.msra.mxu0 0.0
        %2591 = vmatpush.msra.mxu0 0.0
        %2592 = vmatpush.msra.mxu0 0.0
        %2593 = vmatpush.msra.mxu0 0.0
        %2594 = vmatpush.msra.mxu0 0.0
        %2595 = vmatpush.msra.mxu0 0.0
        %2596 = vmatpush.msra.mxu0 0.0
        %2597 = vmatpush.msra.mxu0 0.0
        %2598 = vmatpush.msra.mxu0 0.0
        %2599 = vmatpush.msra.mxu0 0.0
        %2600 = vmatpush.msra.mxu0 0.0
        %2601 = vmatpush.msra.mxu0 0.0
        %2602 = vmatpush.msra.mxu0 %v2585
        %2603 = vmatmul.f32.gmra.mxu0 %v2513
        %v2604 = vpop.f32.mrf.mxu0
        %v2605 = vadd.f32 0.0, %v2604
        %2606 = vmatmul.f32.gmra.mxu0 %v2516
        %v2607 = vpop.f32.mrf.mxu0
        %v2608 = vadd.f32 0.0, %v2607
        %2609 = vmatmul.f32.gmra.mxu0 %v2519
        %v2610 = vpop.f32.mrf.mxu0
        %v2611 = vadd.f32 0.0, %v2610
        %2612 = vmatmul.f32.gmra.mxu0 %v2522
        %v2613 = vpop.f32.mrf.mxu0
        %v2614 = vadd.f32 0.0, %v2613
        %2615 = vmatmul.f32.gmra.mxu0 %v2525
        %v2616 = vpop.f32.mrf.mxu0
        %v2617 = vadd.f32 0.0, %v2616
        %2618 = vmatmul.f32.gmra.mxu0 %v2528
        %v2619 = vpop.f32.mrf.mxu0
        %v2620 = vadd.f32 0.0, %v2619
        %2621 = vmatmul.f32.gmra.mxu0 %v2531
        %v2622 = vpop.f32.mrf.mxu0
        %v2623 = vadd.f32 0.0, %v2622
        %2624 = vmatmul.f32.gmra.mxu0 %v2534
        %v2625 = vpop.f32.mrf.mxu0
        %v2626 = vadd.f32 0.0, %v2625
        %2627 = vmatmul.f32.gmra.mxu0 %v2537
        %v2628 = vpop.f32.mrf.mxu0
        %v2629 = vadd.f32 0.0, %v2628
        %2630 = vmatmul.f32.gmra.mxu0 %v2540
        %v2631 = vpop.f32.mrf.mxu0
        %v2632 = vadd.f32 0.0, %v2631
        %2633 = vmatmul.f32.gmra.mxu0 %v2543
        %v2634 = vpop.f32.mrf.mxu0
        %v2635 = vadd.f32 0.0, %v2634
        %2636 = vmatmul.f32.gmra.mxu0 %v2546
        %v2637 = vpop.f32.mrf.mxu0
        %v2638 = vadd.f32 0.0, %v2637
        %2639 = vmatmul.f32.gmra.mxu0 %v2549
        %v2640 = vpop.f32.mrf.mxu0
        %v2641 = vadd.f32 0.0, %v2640
        %2642 = vmatmul.f32.gmra.mxu0 %v2552
        %v2643 = vpop.f32.mrf.mxu0
        %v2644 = vadd.f32 0.0, %v2643
        %2645 = vmatmul.f32.gmra.mxu0 %v2555
        %v2646 = vpop.f32.mrf.mxu0
        %v2647 = vadd.f32 0.0, %v2646
        %2648 = vmatmul.f32.gmra.mxu0 %v2558
        %v2649 = vpop.f32.mrf.mxu0
        %v2650 = vadd.f32 0.0, %v2649
        %2651 = vmatmul.f32.gmra.mxu0 %v2561
        %v2652 = vpop.f32.mrf.mxu0
        %v2653 = vadd.f32 0.0, %v2652
        %2654 = vmatmul.f32.gmra.mxu0 %v2564
        %v2655 = vpop.f32.mrf.mxu0
        %v2656 = vadd.f32 0.0, %v2655
        %2657 = vmatmul.f32.gmra.mxu0 %v2567
        %v2658 = vpop.f32.mrf.mxu0
        %v2659 = vadd.f32 0.0, %v2658
        %2660 = vmatmul.f32.gmra.mxu0 %v2570
        %v2661 = vpop.f32.mrf.mxu0
        %v2662 = vadd.f32 0.0, %v2661
        %2663 = vmatmul.f32.gmra.mxu0 %v2573
        %v2664 = vpop.f32.mrf.mxu0
        %v2665 = vadd.f32 0.0, %v2664
        %2666 = vmatmul.f32.gmra.mxu0 %v2576
        %v2667 = vpop.f32.mrf.mxu0
        %v2668 = vadd.f32 0.0, %v2667
        %2669 = vmatmul.f32.gmra.mxu0 %v2579
        %v2670 = vpop.f32.mrf.mxu0
        %v2671 = vadd.f32 0.0, %v2670
        %2672 = vmatmul.f32.gmra.mxu0 %v2582
        %v2673 = vpop.f32.mrf.mxu0
        %v2674 = vadd.f32 0.0, %v2673
        %2675 = vdwg.mxu0
        %v2676 = vadd.f32 %v2486, %v2605
        %v2677 = vadd.f32 %v2487, %v2608
        %v2678 = vadd.f32 %v2488, %v2611
        %v2679 = vadd.f32 %v2489, %v2614
        %v2680 = vadd.f32 %v2490, %v2617
        %v2681 = vadd.f32 %v2491, %v2620
        %v2682 = vadd.f32 %v2492, %v2623
        %v2683 = vadd.f32 %v2493, %v2626
        %v2684 = vadd.f32 %v2494, %v2629
        %v2685 = vadd.f32 %v2495, %v2632
        %v2686 = vadd.f32 %v2496, %v2635
        %v2687 = vadd.f32 %v2497, %v2638
        %v2688 = vadd.f32 %v2498, %v2641
        %v2689 = vadd.f32 %v2499, %v2644
        %v2690 = vadd.f32 %v2500, %v2647
        %v2691 = vadd.f32 %v2501, %v2650
        %v2692 = vadd.f32 %v2502, %v2653
        %v2693 = vadd.f32 %v2503, %v2656
        %v2694 = vadd.f32 %v2504, %v2659
        %v2695 = vadd.f32 %v2505, %v2662
        %v2696 = vadd.f32 %v2506, %v2665
        %v2697 = vadd.f32 %v2507, %v2668
        %v2698 = vadd.f32 %v2508, %v2671
        %v2699 = vadd.f32 %v2509, %v2674
        %2700 = vst [vmem:[#allocation2] sm:$0xff] %v2676
        %2701 = vst [vmem:[#allocation2 + $0x8] sm:$0xff] %v2677
        %2702 = vst [vmem:[#allocation2 + $0x10] sm:$0xff] %v2678
        %2703 = vst [vmem:[#allocation2 + $0x18] sm:$0xff] %v2679
        %2704 = vst [vmem:[#allocation2 + $0x20] sm:$0xff] %v2680
        %2705 = vst [vmem:[#allocation2 + $0x28] sm:$0xff] %v2681
        %2706 = vst [vmem:[#allocation2 + $0x30] sm:$0xff] %v2682
        %2707 = vst [vmem:[#allocation2 + $0x38] sm:$0xff] %v2683
        %2708 = vst [vmem:[#allocation2 + $0x40] sm:$0xff] %v2684
        %2709 = vst [vmem:[#allocation2 + $0x48] sm:$0xff] %v2685
        %2710 = vst [vmem:[#allocation2 + $0x50] sm:$0xff] %v2686
        %2711 = vst [vmem:[#allocation2 + $0x58] sm:$0xff] %v2687
        %2712 = vst [vmem:[#allocation2 + $0x60] sm:$0xff] %v2688
        %2713 = vst [vmem:[#allocation2 + $0x68] sm:$0xff] %v2689
        %2714 = vst [vmem:[#allocation2 + $0x70] sm:$0xff] %v2690
        %2715 = vst [vmem:[#allocation2 + $0x78] sm:$0xff] %v2691
        %2716 = vst [vmem:[#allocation2 + $0x80] sm:$0xff] %v2692
        %2717 = vst [vmem:[#allocation2 + $0x88] sm:$0xff] %v2693
        %2718 = vst [vmem:[#allocation2 + $0x90] sm:$0xff] %v2694
        %2719 = vst [vmem:[#allocation2 + $0x98] sm:$0xff] %v2695
        %2720 = vst [vmem:[#allocation2 + $0xa0] sm:$0xff] %v2696
        %2721 = vst [vmem:[#allocation2 + $0xa8] sm:$0xff] %v2697
        %2722 = vst [vmem:[#allocation2 + $0xb0] sm:$0xff] %v2698
        %2723 = vst [vmem:[#allocation2 + $0xb8] sm:$0xff] %v2699
        %v2724 = vld [vmem:[#allocation2] sm:$0xff]
        %v2725 = vld [vmem:[#allocation2 + $0x8] sm:$0xff]
        %v2726 = vld [vmem:[#allocation2 + $0x18] sm:$0xff]
        %v2727 = vld [vmem:[#allocation2 + $0x20] sm:$0xff]
        %v2728 = vld [vmem:[#allocation2 + $0x30] sm:$0xff]
        %v2729 = vld [vmem:[#allocation2 + $0x38] sm:$0xff]
        %v2730 = vld [vmem:[#allocation2 + $0x48] sm:$0xff]
        %v2731 = vld [vmem:[#allocation2 + $0x50] sm:$0xff]
        %v2732 = vld [vmem:[#allocation2 + $0x60] sm:$0xff]
        %v2733 = vld [vmem:[#allocation2 + $0x68] sm:$0xff]
        %v2734 = vld [vmem:[#allocation2 + $0x78] sm:$0xff]
        %v2735 = vld [vmem:[#allocation2 + $0x80] sm:$0xff]
        %v2736 = vld [vmem:[#allocation2 + $0x90] sm:$0xff]
        %v2737 = vld [vmem:[#allocation2 + $0x98] sm:$0xff]
        %v2738 = vld [vmem:[#allocation2 + $0xa8] sm:$0xff]
        %v2739 = vld [vmem:[#allocation2 + $0xb0] sm:$0xff]
        %v2740 = vld [vmem:[%s2] sm:$0x1]
        %v2742 = vperm.slane %v2740, 0
        %v2744 = vadd.f32 %v2724, %v2742
        %v2745 = vadd.f32 %v2725, %v2742
        %v2746 = vadd.f32 %v2726, %v2742
        %v2747 = vadd.f32 %v2727, %v2742
        %v2748 = vadd.f32 %v2728, %v2742
        %v2749 = vadd.f32 %v2729, %v2742
        %v2750 = vadd.f32 %v2730, %v2742
        %v2751 = vadd.f32 %v2731, %v2742
        %v2752 = vadd.f32 %v2732, %v2742
        %v2753 = vadd.f32 %v2733, %v2742
        %v2754 = vadd.f32 %v2734, %v2742
        %v2755 = vadd.f32 %v2735, %v2742
        %v2756 = vadd.f32 %v2736, %v2742
        %v2757 = vadd.f32 %v2737, %v2742
        %v2758 = vadd.f32 %v2738, %v2742
        %v2759 = vadd.f32 %v2739, %v2742
        %v2760 = vmax.f32 %v2744, 0.0
        %v2761 = vmax.f32 %v2745, 0.0
        %v2762 = vmax.f32 %v2746, 0.0
        %v2763 = vmax.f32 %v2747, 0.0
        %v2764 = vmax.f32 %v2748, 0.0
        %v2765 = vmax.f32 %v2749, 0.0
        %v2766 = vmax.f32 %v2750, 0.0
        %v2767 = vmax.f32 %v2751, 0.0
        %v2768 = vmax.f32 %v2752, 0.0
        %v2769 = vmax.f32 %v2753, 0.0
        %v2770 = vmax.f32 %v2754, 0.0
        %v2771 = vmax.f32 %v2755, 0.0
        %v2772 = vmax.f32 %v2756, 0.0
        %v2773 = vmax.f32 %v2757, 0.0
        %v2774 = vmax.f32 %v2758, 0.0
        %v2775 = vmax.f32 %v2759, 0.0
        %2776 = vst [vmem:[%s177] sm:$0xff] %v2760
        %2777 = vst [vmem:[%s177 + $0x8] sm:$0xff] %v2761
        %2778 = vst [vmem:[%s177 + $0x10] sm:$0xff] %v2762
        %2779 = vst [vmem:[%s177 + $0x18] sm:$0xff] %v2763
        %2780 = vst [vmem:[%s177 + $0x20] sm:$0xff] %v2764
        %2781 = vst [vmem:[%s177 + $0x28] sm:$0xff] %v2765
        %2782 = vst [vmem:[%s177 + $0x30] sm:$0xff] %v2766
        %2783 = vst [vmem:[%s177 + $0x38] sm:$0xff] %v2767
        %2784 = vst [vmem:[%s177 + $0x40] sm:$0xff] %v2768
        %2785 = vst [vmem:[%s177 + $0x48] sm:$0xff] %v2769
        %2786 = vst [vmem:[%s177 + $0x50] sm:$0xff] %v2770
        %2787 = vst [vmem:[%s177 + $0x58] sm:$0xff] %v2771
        %2788 = vst [vmem:[%s177 + $0x60] sm:$0xff] %v2772
        %2789 = vst [vmem:[%s177 + $0x68] sm:$0xff] %v2773
        %2790 = vst [vmem:[%s177 + $0x70] sm:$0xff] %v2774
        %2791 = vst [vmem:[%s177 + $0x78] sm:$0xff] %v2775
        %s2792 = sand.u32 %s107, 1
        %s2793 = scalar_lea.sflag [#allocation4], %s2792
        %s2794 = sand.u32 %s107, 1
        %s2795 = smul.addr %s2794, 128
        %s2796 = scalar_lea.vmem [#allocation3], %s2795
        // Predicated region
        $region33: #{tpu_custom_call.1} parent=31 // pred_check
          %p2797 = pneg %p117
        $region34: #{tpu_custom_call.1} parent=31 // pred_check_branch
          %2799 = sbr.rel (%p2797) target = $region36
        $region35: #{tpu_custom_call.1} parent=31 // pred_region
          %s2800 = smul.u32 8, %s22
          %2802 = vsyncadd %s2793, 0
          %s2803 = smul.addr %s2800, 2
          %s2804 = smul.addr %s21, 32
          %s2805 = sadd.s32 %s2803, %s2804
          %s2806 = smul.addr %s2805, 8
          %s2807 = scalar_lea.hbm %s3, %s2806
          %s2808 = sshll.u32 %s2796, 4
          %s2809 = int_to_ptr.vmem [resolvable:$true] %s2808
          %s2810 = sshll.u32 %s2807, 4
          %s2811 = int_to_ptr.hbm [resolvable:$true] %s2810
          %2816 = dma.vmem_to_hbm [thread:$0]  %s2809, 2048, %s2811, %s2793, 128, 128, 8
        $region36: #{tpu_custom_call.1} parent=31 // pred_fallthru
          _
      $region32: #{tpu_custom_call.1} parent=5 // pred_fallthru
        _
      %p2817 = scmp.le.s32.totalorder 2, %s12
      // Predicated region
      $region37: #{tpu_custom_call.1} parent=5 // pred_check
        %p2818 = pneg %p2817
      $region38: #{tpu_custom_call.1} parent=5 // pred_check_branch
        %2820 = sbr.rel (%p2818) target = $region40
      $region39: #{tpu_custom_call.1} parent=5 // pred_region
        %s2821 = ssub.s32 %s12, 2
        // Predicated region
        $region41: #{tpu_custom_call.1} parent=39 // pred_check
          %p2822 = pneg %p123
        $region42: #{tpu_custom_call.1} parent=39 // pred_check_branch
          %2824 = sbr.rel (%p2822) target = $region44
        $region43: #{tpu_custom_call.1} parent=39 // pred_region
          %s2825 = sand.u32 %s108, 1
          %s2826 = scalar_lea.sflag [#allocation4], %s2825
          %s2827 = sand.u32 %s108, 1
          %s2828 = smul.addr %s2827, 128
          %s2829 = scalar_lea.vmem [#allocation3], %s2828
          %2831 = dma.done %s2826, 2048
        $region44: #{tpu_custom_call.1} parent=39 // pred_fallthru
          _
      $region40: #{tpu_custom_call.1} parent=5 // pred_fallthru
        _
    $region6: #{tpu_custom_call.1} parent=1 // loop_footer
      %s16 = sadd.s32 1, %s12
    $region7: #{tpu_custom_call.1} parent=1 // loop_footer_branch
      %11 = sbr.rel target = $region3
    $region8: #{tpu_custom_call.1} parent=1 // loop_exit
      _
    %2832 = vsyncpa [#allocation4], 1
    %s2833 = scalar_lea.sflag [#allocation4], 1
    %2834 = vsyncpa %s2833, 1

</llo_original>
